<compile_context>
chip_gen: v7x
topology: tpu7x:2x2x1
jax: 0.10.0
libtpu: 0.0.40
codegen_flags: <defaults>
</compile_context>

<pallas_src>
import functools

import jax
import jax.numpy as jnp
from jax import lax
from jax.experimental import pallas as pl
from jax.experimental.pallas import tpu as pltpu


def gru_softmax_kernel(x_ref, wi_ref, wh_ref, bi_ref, bhn_ref, y_ref, h_ref,
                       *, t_tile, b_pad, h_valid):
    """One time-chunk of the GRU + per-step softmax.

    x_ref:   (t_tile*b_pad, D)      time-major rows of this chunk (padded batch)
    wi_ref:  (D, 3*H_pad)           fused input-gate weights [r|z|n] (pre-transposed)
    wh_ref:  (H_pad, 3*H_pad)       fused hidden-gate weights [r|z|n]
    bi_ref:  (1, 3*H_pad)           [b_ir+b_hr | b_iz+b_hz | b_in]
    bhn_ref: (1, H_pad)             b_hn
    y_ref:   (t_tile*b_pad, H_pad)  softmax(h_t), lane-dense
    h_ref:   (b_pad, H_pad)         VMEM scratch: hidden state carried across grid steps
    """
    h_pad = wh_ref.shape[0]

    @pl.when(pl.program_id(0) == 0)
    def _init():
        h_ref[...] = jnp.zeros_like(h_ref)

    # Hoisted input projection: one big MXU matmul for the whole chunk (no serial
    # dependence on h). r/z biases (and b_in) are already folded into bi_ref.
    gi_all = (jnp.dot(x_ref[...], wi_ref[...],
                      preferred_element_type=jnp.float32) + bi_ref[...])

    w_h = wh_ref[...]
    b_hn = bhn_ref[...]

    # Mask selecting the real (unpadded) hidden lanes for the softmax.
    valid = lax.broadcasted_iota(jnp.int32, (b_pad, h_pad), 1) < h_valid

    h = h_ref[...]
    for t in range(t_tile):  # static unroll: short serial chain, full LLO visibility
        gi = gi_all[t * b_pad:(t + 1) * b_pad, :]            # (b_pad, 3*H_pad), aligned
        gh = jnp.dot(h, w_h, preferred_element_type=jnp.float32)

        r = jax.nn.sigmoid(gi[:, :h_pad] + gh[:, :h_pad])
        z = jax.nn.sigmoid(gi[:, h_pad:2 * h_pad] + gh[:, h_pad:2 * h_pad])
        n = jnp.tanh(gi[:, 2 * h_pad:] + r * (gh[:, 2 * h_pad:] + b_hn))
        h = (1.0 - z) * n + z * h

        # Numerically stable softmax over the valid hidden lanes only.
        logits = jnp.where(valid, h, -1e30)
        m = jnp.max(logits, axis=-1, keepdims=True)
        e = jnp.exp(logits - m)
        s = jnp.sum(e, axis=-1, keepdims=True)
        inv = pl.reciprocal(s, approx=True)
        inv = inv * (2.0 - s * inv)              # one Newton step -> ~f32 accuracy
        y_ref[t * b_pad:(t + 1) * b_pad, :] = (e * inv).astype(y_ref.dtype)

    h_ref[...] = h


def init_gru_params(key, input_dim, hidden_dim):
    """Deterministic init matching torch.nn.GRU parameter shapes.

    weight_ih: (3H, D), weight_hh: (3H, H), bias_ih/bias_hh: (3H,)
    (gate order: r, z, n). Uniform(-1/sqrt(H), 1/sqrt(H)) like PyTorch.
    """
    k = 1.0 / jnp.sqrt(jnp.float32(hidden_dim))
    keys = jax.random.split(key, 4)
    weight_ih = jax.random.uniform(keys[0], (3 * hidden_dim, input_dim),
                                   jnp.float32, -k, k)
    weight_hh = jax.random.uniform(keys[1], (3 * hidden_dim, hidden_dim),
                                   jnp.float32, -k, k)
    bias_ih = jax.random.uniform(keys[2], (3 * hidden_dim,), jnp.float32, -k, k)
    bias_hh = jax.random.uniform(keys[3], (3 * hidden_dim,), jnp.float32, -k, k)
    return dict(weight_ih=weight_ih, weight_hh=weight_hh,
                bias_ih=bias_ih, bias_hh=bias_hh)


def basic_recurrent_forward(x, params, *, t_tile=8):
    """x: (B, T, D) batch-first (PyTorch convention). Returns (B, T, H)."""
    B, T, D = x.shape
    H = params["weight_hh"].shape[1]

    H_pad = ((H + 127) // 128) * 128       # lane-dense hidden/output dim
    B_pad = ((B + 7) // 8) * 8             # full f32 sublane tiles
    T_pad = ((T + t_tile - 1) // t_tile) * t_tile

    w_ih = params["weight_ih"].astype(jnp.float32)   # (3H, D)  gate order r, z, n
    w_hh = params["weight_hh"].astype(jnp.float32)   # (3H, H)
    b_ih = params["bias_ih"].astype(jnp.float32)     # (3H,)
    b_hh = params["bias_hh"].astype(jnp.float32)     # (3H,)

    def pad_cols(m):
        return jnp.pad(m, ((0, 0), (0, H_pad - m.shape[1])))

    def pad_vec(v):
        return jnp.pad(v, (0, H_pad - v.shape[0]))

    # Fused, pre-transposed, lane-padded weights: [r | z | n] along the last axis.
    wi_all = jnp.concatenate(
        [pad_cols(w_ih[g * H:(g + 1) * H].T) for g in range(3)], axis=1)   # (D, 3H_pad)
    wh_all = jnp.concatenate(
        [pad_cols(w_hh[g * H:(g + 1) * H].T) for g in range(3)], axis=1)   # (H, 3H_pad)
    wh_all = jnp.pad(wh_all, ((0, H_pad - H), (0, 0)))                     # (H_pad, 3H_pad)

    # r/z biases pre-summed; b_in folded into the hoisted projection; b_hn separate.
    bi_all = jnp.concatenate([pad_vec(b_ih[0:H] + b_hh[0:H]),
                              pad_vec(b_ih[H:2 * H] + b_hh[H:2 * H]),
                              pad_vec(b_ih[2 * H:3 * H])]).reshape(1, 3 * H_pad)
    bhn = pad_vec(b_hh[2 * H:3 * H]).reshape(1, H_pad)

    # Time-major, batch/time padded, flattened to 2-D rows for sublane-aligned slicing.
    x_tbd = jnp.transpose(x.astype(jnp.float32), (1, 0, 2))                # (T, B, D)
    x_tbd = jnp.pad(x_tbd, ((0, T_pad - T), (0, B_pad - B), (0, 0)))
    x_2d = x_tbd.reshape(T_pad * B_pad, D)

    rows = t_tile * B_pad
    kernel = functools.partial(gru_softmax_kernel,
                               t_tile=t_tile, b_pad=B_pad, h_valid=H)

    y_2d = pl.pallas_call(
        kernel,
        out_shape=jax.ShapeDtypeStruct((T_pad * B_pad, H_pad), jnp.float32),
        grid_spec=pltpu.PrefetchScalarGridSpec(
            num_scalar_prefetch=0,
            grid=(T_pad // t_tile,),
            in_specs=[
                pl.BlockSpec((rows, D), lambda i: (i, 0)),                 # x chunk
                pl.BlockSpec((D, 3 * H_pad), lambda i: (0, 0)),            # W_i_all
                pl.BlockSpec((H_pad, 3 * H_pad), lambda i: (0, 0)),        # W_h_all
                pl.BlockSpec((1, 3 * H_pad), lambda i: (0, 0)),            # bi_all
                pl.BlockSpec((1, H_pad), lambda i: (0, 0)),                # b_hn
            ],
            out_specs=pl.BlockSpec((rows, H_pad), lambda i: (i, 0)),       # y chunk
            scratch_shapes=[pltpu.VMEM((B_pad, H_pad), jnp.float32)],      # carried h
        ),
        compiler_params=pltpu.CompilerParams(
            # Time chunks are strictly sequential (hidden state carried in scratch).
            dimension_semantics=("arbitrary",),
        ),
    )(x_2d, wi_all, wh_all, bi_all, bhn)

    y = y_2d.reshape(T_pad, B_pad, H_pad)[:T, :B, :H]
    return jnp.transpose(y, (1, 0, 2))  # (B, T, H)


def reference_forward(x, params):
    """Pure-JAX reference of torch GRU (batch_first) + softmax."""
    B, T, D = x.shape
    H = params["weight_hh"].shape[1]
    w_ih, w_hh = params["weight_ih"], params["weight_hh"]
    b_ih, b_hh = params["bias_ih"], params["bias_hh"]

    def step(h, x_t):
        gi = x_t @ w_ih.T + b_ih      # (B, 3H)
        gh = h @ w_hh.T + b_hh        # (B, 3H)
        r = jax.nn.sigmoid(gi[:, :H] + gh[:, :H])
        z = jax.nn.sigmoid(gi[:, H:2 * H] + gh[:, H:2 * H])
        n = jnp.tanh(gi[:, 2 * H:] + r * gh[:, 2 * H:])
        h_new = (1.0 - z) * n + z * h
        return h_new, h_new

    h0 = jnp.zeros((B, H), jnp.float32)
    _, hs = lax.scan(step, h0, jnp.transpose(x, (1, 0, 2)))
    out = jnp.transpose(hs, (1, 0, 2))
    return jax.nn.softmax(out, axis=-1)


if __name__ == "__main__":
    key = jax.random.PRNGKey(0)
    k_param, k_x = jax.random.split(key)

    batch, seq_len, input_dim, output_dim = 2, 8, 32, 29
    params = init_gru_params(k_param, input_dim, output_dim)
    x = jax.random.normal(k_x, (batch, seq_len, input_dim), dtype=jnp.float32)

    # t_tile=4 -> 2 grid steps, exercising the carried-hidden-state scratch path.
    y = basic_recurrent_forward(x, params, t_tile=4)
    y = jax.block_until_ready(y)

    y_ref = jax.block_until_ready(reference_forward(x, params))
    assert y.shape == (batch, seq_len, output_dim)
    assert jnp.allclose(y, y_ref, atol=1e-5, rtol=1e-5), "mismatch vs JAX reference"

    print("KERNEL_OK")
</pallas_src>

<mosaic_0001>
module attributes {stable_mosaic.version = 11 : i64} {
  func.func @gru_softmax_kernel(%arg0: i32, %arg1: memref<32x32xf32, #tpu.memory_space<vmem>>, %arg2: memref<32x384xf32, #tpu.memory_space<vmem>>, %arg3: memref<128x384xf32, #tpu.memory_space<vmem>>, %arg4: memref<1x384xf32, #tpu.memory_space<vmem>>, %arg5: memref<1x128xf32, #tpu.memory_space<vmem>>, %arg6: memref<32x128xf32, #tpu.memory_space<vmem>>, %arg7: memref<8x128xf32, #tpu.memory_space<vmem>>) attributes {dimension_semantics = [#tpu.dimension_semantics<arbitrary>], iteration_bounds = array<i64: 2>, scalar_prefetch = 0 : i64, scratch_operands = 1 : i64, tpu.core_type = #tpu.core_type<tc>, window_params = [{transform_indices = @transform_0, window_bounds = array<i64: 32, 32>}, {pipeline_mode = #tpu.pipeline_mode<synchronous>, transform_indices = @transform_1, window_bounds = array<i64: 32, 384>}, {pipeline_mode = #tpu.pipeline_mode<synchronous>, transform_indices = @transform_2, window_bounds = array<i64: 128, 384>}, {pipeline_mode = #tpu.pipeline_mode<synchronous>, transform_indices = @transform_3, window_bounds = array<i64: 1, 384>}, {pipeline_mode = #tpu.pipeline_mode<synchronous>, transform_indices = @transform_4, window_bounds = array<i64: 1, 128>}, {transform_indices = @transform_5, window_bounds = array<i64: 32, 128>}]} {
    %c0_i32 = arith.constant 0 : i32
    %0 = arith.cmpi eq, %arg0, %c0_i32 : i32
    %1 = arith.extui %0 : i1 to i32
    %c0_i32_0 = arith.constant 0 : i32
    %2 = arith.cmpi ne, %1, %c0_i32_0 : i32
    scf.if %2 {
      %cst_51 = arith.constant 0.000000e+00 : f32
      %204 = vector.broadcast %cst_51 : f32 to vector<8x128xf32>
      %c0_52 = arith.constant 0 : index
      %c0_53 = arith.constant 0 : index
      %205 = vector.load %arg7[%c0_52, %c0_53] : memref<8x128xf32, #tpu.memory_space<vmem>>, vector<8x128xf32>
      tpu.vector_store %arg7[%c0_52, %c0_53], %204 {strides = array<i32>} : memref<8x128xf32, #tpu.memory_space<vmem>>, vector<8x128xf32>,
    } else {
    }
    %c0 = arith.constant 0 : index
    %c0_1 = arith.constant 0 : index
    %3 = vector.load %arg1[%c0, %c0_1] : memref<32x32xf32, #tpu.memory_space<vmem>>, vector<32x32xf32>
    %c0_2 = arith.constant 0 : index
    %c0_3 = arith.constant 0 : index
    %4 = vector.load %arg2[%c0_2, %c0_3] : memref<32x384xf32, #tpu.memory_space<vmem>>, vector<32x384xf32>
    %cst = arith.constant dense<0.000000e+00> : vector<32x384xf32>
    %5 = tpu.matmul %3, %4, %cst {dimension_numbers = #tpu.dot_dimension_numbers<[1], [0], [0], [1], [0, 0, 1, 1], [], []>} : vector<32x32xf32>, vector<32x384xf32>, vector<32x384xf32> -> vector<32x384xf32>
    %c0_4 = arith.constant 0 : index
    %c0_5 = arith.constant 0 : index
    %6 = vector.load %arg4[%c0_4, %c0_5] : memref<1x384xf32, #tpu.memory_space<vmem>>, vector<1x384xf32>
    %7 = vector.broadcast %6 : vector<1x384xf32> to vector<32x384xf32>
    %8 = arith.addf %5, %7 : vector<32x384xf32>
    %c0_6 = arith.constant 0 : index
    %c0_7 = arith.constant 0 : index
    %9 = vector.load %arg3[%c0_6, %c0_7] : memref<128x384xf32, #tpu.memory_space<vmem>>, vector<128x384xf32>
    %c0_8 = arith.constant 0 : index
    %c0_9 = arith.constant 0 : index
    %10 = vector.load %arg5[%c0_8, %c0_9] : memref<1x128xf32, #tpu.memory_space<vmem>>, vector<1x128xf32>
    %11 = tpu.iota {dimensions = array<i32: 1>} : vector<8x128xi32>
    %c29_i32 = arith.constant 29 : i32
    %12 = vector.broadcast %c29_i32 : i32 to vector<8x128xi32>
    %13 = arith.cmpi slt, %11, %12 : vector<8x128xi32>
    %c0_10 = arith.constant 0 : index
    %c0_11 = arith.constant 0 : index
    %14 = vector.load %arg7[%c0_10, %c0_11] : memref<8x128xf32, #tpu.memory_space<vmem>>, vector<8x128xf32>
    %15 = vector.extract_strided_slice %8 {offsets = [0, 0], sizes = [8, 384], strides = [1, 1]} : vector<32x384xf32> to vector<8x384xf32>
    %cst_12 = arith.constant dense<0.000000e+00> : vector<8x384xf32>
    %16 = tpu.matmul %14, %9, %cst_12 {dimension_numbers = #tpu.dot_dimension_numbers<[1], [0], [0], [1], [0, 0, 1, 1], [], []>} : vector<8x128xf32>, vector<128x384xf32>, vector<8x384xf32> -> vector<8x384xf32>
    %17 = vector.extract_strided_slice %15 {offsets = [0, 0], sizes = [8, 128], strides = [1, 1]} : vector<8x384xf32> to vector<8x128xf32>
    %18 = vector.extract_strided_slice %16 {offsets = [0, 0], sizes = [8, 128], strides = [1, 1]} : vector<8x384xf32> to vector<8x128xf32>
    %19 = arith.addf %17, %18 : vector<8x128xf32>
    %20 = arith.negf %19 : vector<8x128xf32>
    %21 = math.exp %20 : vector<8x128xf32>
    %cst_13 = arith.constant 1.000000e+00 : f32
    %22 = vector.broadcast %cst_13 : f32 to vector<8x128xf32>
    %23 = arith.addf %22, %21 : vector<8x128xf32>
    %24 = arith.divf %22, %23 : vector<8x128xf32>
    %25 = vector.extract_strided_slice %15 {offsets = [0, 128], sizes = [8, 128], strides = [1, 1]} : vector<8x384xf32> to vector<8x128xf32>
    %26 = vector.extract_strided_slice %16 {offsets = [0, 128], sizes = [8, 128], strides = [1, 1]} : vector<8x384xf32> to vector<8x128xf32>
    %27 = arith.addf %25, %26 : vector<8x128xf32>
    %28 = arith.negf %27 : vector<8x128xf32>
    %29 = math.exp %28 : vector<8x128xf32>
    %cst_14 = arith.constant 1.000000e+00 : f32
    %30 = vector.broadcast %cst_14 : f32 to vector<8x128xf32>
    %31 = arith.addf %30, %29 : vector<8x128xf32>
    %32 = arith.divf %30, %31 : vector<8x128xf32>
    %33 = vector.extract_strided_slice %15 {offsets = [0, 256], sizes = [8, 128], strides = [1, 1]} : vector<8x384xf32> to vector<8x128xf32>
    %34 = vector.extract_strided_slice %16 {offsets = [0, 256], sizes = [8, 128], strides = [1, 1]} : vector<8x384xf32> to vector<8x128xf32>
    %35 = vector.broadcast %10 : vector<1x128xf32> to vector<8x128xf32>
    %36 = arith.addf %34, %35 : vector<8x128xf32>
    %37 = arith.mulf %24, %36 : vector<8x128xf32>
    %38 = arith.addf %33, %37 : vector<8x128xf32>
    %39 = math.tanh %38 : vector<8x128xf32>
    %cst_15 = arith.constant 1.000000e+00 : f32
    %40 = vector.broadcast %cst_15 : f32 to vector<8x128xf32>
    %41 = arith.subf %40, %32 : vector<8x128xf32>
    %42 = arith.mulf %41, %39 : vector<8x128xf32>
    %43 = arith.mulf %32, %14 : vector<8x128xf32>
    %44 = arith.addf %42, %43 : vector<8x128xf32>
    %cst_16 = arith.constant -1.000000e+30 : f32
    %45 = vector.broadcast %cst_16 : f32 to vector<8x128xf32>
    %46 = arith.select %13, %44, %45 : vector<8x128xi1>, vector<8x128xf32>
    %cst_17 = arith.constant dense<0xFF800000> : vector<8xf32>
    %47 = vector.multi_reduction <maximumf>, %46, %cst_17 [1] : vector<8x128xf32> to vector<8xf32>
    %48 = vector.shape_cast %47 : vector<8xf32> to vector<8x1xf32>
    %49 = vector.broadcast %48 : vector<8x1xf32> to vector<8x128xf32>
    %50 = arith.subf %46, %49 : vector<8x128xf32>
    %51 = math.exp %50 : vector<8x128xf32>
    %cst_18 = arith.constant dense<0.000000e+00> : vector<8xf32>
    %52 = vector.multi_reduction <add>, %51, %cst_18 [1] : vector<8x128xf32> to vector<8xf32>
    %53 = vector.shape_cast %52 : vector<8xf32> to vector<8x1xf32>
    %54 = tpu.reciprocal %53 {approx = true} : vector<8x1xf32> -> vector<8x1xf32>
    %55 = arith.mulf %53, %54 : vector<8x1xf32>
    %cst_19 = arith.constant 2.000000e+00 : f32
    %56 = vector.broadcast %cst_19 : f32 to vector<8x1xf32>
    %57 = arith.subf %56, %55 : vector<8x1xf32>
    %58 = arith.mulf %54, %57 : vector<8x1xf32>
    %59 = vector.broadcast %58 : vector<8x1xf32> to vector<8x128xf32>
    %60 = arith.mulf %51, %59 : vector<8x128xf32>
    %c0_20 = arith.constant 0 : index
    %c0_21 = arith.constant 0 : index
    %61 = vector.load %arg6[%c0_20, %c0_21] : memref<32x128xf32, #tpu.memory_space<vmem>>, vector<8x128xf32>
    tpu.vector_store %arg6[%c0_20, %c0_21], %60 {strides = array<i32>} : memref<32x128xf32, #tpu.memory_space<vmem>>, vector<8x128xf32>,
    %62 = vector.extract_strided_slice %8 {offsets = [8, 0], sizes = [8, 384], strides = [1, 1]} : vector<32x384xf32> to vector<8x384xf32>
    %cst_22 = arith.constant dense<0.000000e+00> : vector<8x384xf32>
    %63 = tpu.matmul %44, %9, %cst_22 {dimension_numbers = #tpu.dot_dimension_numbers<[1], [0], [0], [1], [0, 0, 1, 1], [], []>} : vector<8x128xf32>, vector<128x384xf32>, vector<8x384xf32> -> vector<8x384xf32>
    %64 = vector.extract_strided_slice %62 {offsets = [0, 0], sizes = [8, 128], strides = [1, 1]} : vector<8x384xf32> to vector<8x128xf32>
    %65 = vector.extract_strided_slice %63 {offsets = [0, 0], sizes = [8, 128], strides = [1, 1]} : vector<8x384xf32> to vector<8x128xf32>
    %66 = arith.addf %64, %65 : vector<8x128xf32>
    %67 = arith.negf %66 : vector<8x128xf32>
    %68 = math.exp %67 : vector<8x128xf32>
    %cst_23 = arith.constant 1.000000e+00 : f32
    %69 = vector.broadcast %cst_23 : f32 to vector<8x128xf32>
    %70 = arith.addf %69, %68 : vector<8x128xf32>
    %71 = arith.divf %69, %70 : vector<8x128xf32>
    %72 = vector.extract_strided_slice %62 {offsets = [0, 128], sizes = [8, 128], strides = [1, 1]} : vector<8x384xf32> to vector<8x128xf32>
    %73 = vector.extract_strided_slice %63 {offsets = [0, 128], sizes = [8, 128], strides = [1, 1]} : vector<8x384xf32> to vector<8x128xf32>
    %74 = arith.addf %72, %73 : vector<8x128xf32>
    %75 = arith.negf %74 : vector<8x128xf32>
    %76 = math.exp %75 : vector<8x128xf32>
    %cst_24 = arith.constant 1.000000e+00 : f32
    %77 = vector.broadcast %cst_24 : f32 to vector<8x128xf32>
    %78 = arith.addf %77, %76 : vector<8x128xf32>
    %79 = arith.divf %77, %78 : vector<8x128xf32>
    %80 = vector.extract_strided_slice %62 {offsets = [0, 256], sizes = [8, 128], strides = [1, 1]} : vector<8x384xf32> to vector<8x128xf32>
    %81 = vector.extract_strided_slice %63 {offsets = [0, 256], sizes = [8, 128], strides = [1, 1]} : vector<8x384xf32> to vector<8x128xf32>
    %82 = vector.broadcast %10 : vector<1x128xf32> to vector<8x128xf32>
    %83 = arith.addf %81, %82 : vector<8x128xf32>
    %84 = arith.mulf %71, %83 : vector<8x128xf32>
    %85 = arith.addf %80, %84 : vector<8x128xf32>
    %86 = math.tanh %85 : vector<8x128xf32>
    %cst_25 = arith.constant 1.000000e+00 : f32
    %87 = vector.broadcast %cst_25 : f32 to vector<8x128xf32>
    %88 = arith.subf %87, %79 : vector<8x128xf32>
    %89 = arith.mulf %88, %86 : vector<8x128xf32>
    %90 = arith.mulf %79, %44 : vector<8x128xf32>
    %91 = arith.addf %89, %90 : vector<8x128xf32>
    %cst_26 = arith.constant -1.000000e+30 : f32
    %92 = vector.broadcast %cst_26 : f32 to vector<8x128xf32>
    %93 = arith.select %13, %91, %92 : vector<8x128xi1>, vector<8x128xf32>
    %cst_27 = arith.constant dense<0xFF800000> : vector<8xf32>
    %94 = vector.multi_reduction <maximumf>, %93, %cst_27 [1] : vector<8x128xf32> to vector<8xf32>
    %95 = vector.shape_cast %94 : vector<8xf32> to vector<8x1xf32>
    %96 = vector.broadcast %95 : vector<8x1xf32> to vector<8x128xf32>
    %97 = arith.subf %93, %96 : vector<8x128xf32>
    %98 = math.exp %97 : vector<8x128xf32>
    %cst_28 = arith.constant dense<0.000000e+00> : vector<8xf32>
    %99 = vector.multi_reduction <add>, %98, %cst_28 [1] : vector<8x128xf32> to vector<8xf32>
    %100 = vector.shape_cast %99 : vector<8xf32> to vector<8x1xf32>
    %101 = tpu.reciprocal %100 {approx = true} : vector<8x1xf32> -> vector<8x1xf32>
    %102 = arith.mulf %100, %101 : vector<8x1xf32>
    %cst_29 = arith.constant 2.000000e+00 : f32
    %103 = vector.broadcast %cst_29 : f32 to vector<8x1xf32>
    %104 = arith.subf %103, %102 : vector<8x1xf32>
    %105 = arith.mulf %101, %104 : vector<8x1xf32>
    %106 = vector.broadcast %105 : vector<8x1xf32> to vector<8x128xf32>
    %107 = arith.mulf %98, %106 : vector<8x128xf32>
    %c8 = arith.constant 8 : index
    %c0_30 = arith.constant 0 : index
    %108 = vector.load %arg6[%c8, %c0_30] : memref<32x128xf32, #tpu.memory_space<vmem>>, vector<8x128xf32>
    tpu.vector_store %arg6[%c8, %c0_30], %107 {strides = array<i32>} : memref<32x128xf32, #tpu.memory_space<vmem>>, vector<8x128xf32>,
    %109 = vector.extract_strided_slice %8 {offsets = [16, 0], sizes = [8, 384], strides = [1, 1]} : vector<32x384xf32> to vector<8x384xf32>
    %cst_31 = arith.constant dense<0.000000e+00> : vector<8x384xf32>
    %110 = tpu.matmul %91, %9, %cst_31 {dimension_numbers = #tpu.dot_dimension_numbers<[1], [0], [0], [1], [0, 0, 1, 1], [], []>} : vector<8x128xf32>, vector<128x384xf32>, vector<8x384xf32> -> vector<8x384xf32>
    %111 = vector.extract_strided_slice %109 {offsets = [0, 0], sizes = [8, 128], strides = [1, 1]} : vector<8x384xf32> to vector<8x128xf32>
    %112 = vector.extract_strided_slice %110 {offsets = [0, 0], sizes = [8, 128], strides = [1, 1]} : vector<8x384xf32> to vector<8x128xf32>
    %113 = arith.addf %111, %112 : vector<8x128xf32>
    %114 = arith.negf %113 : vector<8x128xf32>
    %115 = math.exp %114 : vector<8x128xf32>
    %cst_32 = arith.constant 1.000000e+00 : f32
    %116 = vector.broadcast %cst_32 : f32 to vector<8x128xf32>
    %117 = arith.addf %116, %115 : vector<8x128xf32>
    %118 = arith.divf %116, %117 : vector<8x128xf32>
    %119 = vector.extract_strided_slice %109 {offsets = [0, 128], sizes = [8, 128], strides = [1, 1]} : vector<8x384xf32> to vector<8x128xf32>
    %120 = vector.extract_strided_slice %110 {offsets = [0, 128], sizes = [8, 128], strides = [1, 1]} : vector<8x384xf32> to vector<8x128xf32>
    %121 = arith.addf %119, %120 : vector<8x128xf32>
    %122 = arith.negf %121 : vector<8x128xf32>
    %123 = math.exp %122 : vector<8x128xf32>
    %cst_33 = arith.constant 1.000000e+00 : f32
    %124 = vector.broadcast %cst_33 : f32 to vector<8x128xf32>
    %125 = arith.addf %124, %123 : vector<8x128xf32>
    %126 = arith.divf %124, %125 : vector<8x128xf32>
    %127 = vector.extract_strided_slice %109 {offsets = [0, 256], sizes = [8, 128], strides = [1, 1]} : vector<8x384xf32> to vector<8x128xf32>
    %128 = vector.extract_strided_slice %110 {offsets = [0, 256], sizes = [8, 128], strides = [1, 1]} : vector<8x384xf32> to vector<8x128xf32>
    %129 = vector.broadcast %10 : vector<1x128xf32> to vector<8x128xf32>
    %130 = arith.addf %128, %129 : vector<8x128xf32>
    %131 = arith.mulf %118, %130 : vector<8x128xf32>
    %132 = arith.addf %127, %131 : vector<8x128xf32>
    %133 = math.tanh %132 : vector<8x128xf32>
    %cst_34 = arith.constant 1.000000e+00 : f32
    %134 = vector.broadcast %cst_34 : f32 to vector<8x128xf32>
    %135 = arith.subf %134, %126 : vector<8x128xf32>
    %136 = arith.mulf %135, %133 : vector<8x128xf32>
    %137 = arith.mulf %126, %91 : vector<8x128xf32>
    %138 = arith.addf %136, %137 : vector<8x128xf32>
    %cst_35 = arith.constant -1.000000e+30 : f32
    %139 = vector.broadcast %cst_35 : f32 to vector<8x128xf32>
    %140 = arith.select %13, %138, %139 : vector<8x128xi1>, vector<8x128xf32>
    %cst_36 = arith.constant dense<0xFF800000> : vector<8xf32>
    %141 = vector.multi_reduction <maximumf>, %140, %cst_36 [1] : vector<8x128xf32> to vector<8xf32>
    %142 = vector.shape_cast %141 : vector<8xf32> to vector<8x1xf32>
    %143 = vector.broadcast %142 : vector<8x1xf32> to vector<8x128xf32>
    %144 = arith.subf %140, %143 : vector<8x128xf32>
    %145 = math.exp %144 : vector<8x128xf32>
    %cst_37 = arith.constant dense<0.000000e+00> : vector<8xf32>
    %146 = vector.multi_reduction <add>, %145, %cst_37 [1] : vector<8x128xf32> to vector<8xf32>
    %147 = vector.shape_cast %146 : vector<8xf32> to vector<8x1xf32>
    %148 = tpu.reciprocal %147 {approx = true} : vector<8x1xf32> -> vector<8x1xf32>
    %149 = arith.mulf %147, %148 : vector<8x1xf32>
    %cst_38 = arith.constant 2.000000e+00 : f32
    %150 = vector.broadcast %cst_38 : f32 to vector<8x1xf32>
    %151 = arith.subf %150, %149 : vector<8x1xf32>
    %152 = arith.mulf %148, %151 : vector<8x1xf32>
    %153 = vector.broadcast %152 : vector<8x1xf32> to vector<8x128xf32>
    %154 = arith.mulf %145, %153 : vector<8x128xf32>
    %c16 = arith.constant 16 : index
    %c0_39 = arith.constant 0 : index
    %155 = vector.load %arg6[%c16, %c0_39] : memref<32x128xf32, #tpu.memory_space<vmem>>, vector<8x128xf32>
    tpu.vector_store %arg6[%c16, %c0_39], %154 {strides = array<i32>} : memref<32x128xf32, #tpu.memory_space<vmem>>, vector<8x128xf32>,
    %156 = vector.extract_strided_slice %8 {offsets = [24, 0], sizes = [8, 384], strides = [1, 1]} : vector<32x384xf32> to vector<8x384xf32>
    %cst_40 = arith.constant dense<0.000000e+00> : vector<8x384xf32>
    %157 = tpu.matmul %138, %9, %cst_40 {dimension_numbers = #tpu.dot_dimension_numbers<[1], [0], [0], [1], [0, 0, 1, 1], [], []>} : vector<8x128xf32>, vector<128x384xf32>, vector<8x384xf32> -> vector<8x384xf32>
    %158 = vector.extract_strided_slice %156 {offsets = [0, 0], sizes = [8, 128], strides = [1, 1]} : vector<8x384xf32> to vector<8x128xf32>
    %159 = vector.extract_strided_slice %157 {offsets = [0, 0], sizes = [8, 128], strides = [1, 1]} : vector<8x384xf32> to vector<8x128xf32>
    %160 = arith.addf %158, %159 : vector<8x128xf32>
    %161 = arith.negf %160 : vector<8x128xf32>
    %162 = math.exp %161 : vector<8x128xf32>
    %cst_41 = arith.constant 1.000000e+00 : f32
    %163 = vector.broadcast %cst_41 : f32 to vector<8x128xf32>
    %164 = arith.addf %163, %162 : vector<8x128xf32>
    %165 = arith.divf %163, %164 : vector<8x128xf32>
    %166 = vector.extract_strided_slice %156 {offsets = [0, 128], sizes = [8, 128], strides = [1, 1]} : vector<8x384xf32> to vector<8x128xf32>
    %167 = vector.extract_strided_slice %157 {offsets = [0, 128], sizes = [8, 128], strides = [1, 1]} : vector<8x384xf32> to vector<8x128xf32>
    %168 = arith.addf %166, %167 : vector<8x128xf32>
    %169 = arith.negf %168 : vector<8x128xf32>
    %170 = math.exp %169 : vector<8x128xf32>
    %cst_42 = arith.constant 1.000000e+00 : f32
    %171 = vector.broadcast %cst_42 : f32 to vector<8x128xf32>
    %172 = arith.addf %171, %170 : vector<8x128xf32>
    %173 = arith.divf %171, %172 : vector<8x128xf32>
    %174 = vector.extract_strided_slice %156 {offsets = [0, 256], sizes = [8, 128], strides = [1, 1]} : vector<8x384xf32> to vector<8x128xf32>
    %175 = vector.extract_strided_slice %157 {offsets = [0, 256], sizes = [8, 128], strides = [1, 1]} : vector<8x384xf32> to vector<8x128xf32>
    %176 = vector.broadcast %10 : vector<1x128xf32> to vector<8x128xf32>
    %177 = arith.addf %175, %176 : vector<8x128xf32>
    %178 = arith.mulf %165, %177 : vector<8x128xf32>
    %179 = arith.addf %174, %178 : vector<8x128xf32>
    %180 = math.tanh %179 : vector<8x128xf32>
    %cst_43 = arith.constant 1.000000e+00 : f32
    %181 = vector.broadcast %cst_43 : f32 to vector<8x128xf32>
    %182 = arith.subf %181, %173 : vector<8x128xf32>
    %183 = arith.mulf %182, %180 : vector<8x128xf32>
    %184 = arith.mulf %173, %138 : vector<8x128xf32>
    %185 = arith.addf %183, %184 : vector<8x128xf32>
    %cst_44 = arith.constant -1.000000e+30 : f32
    %186 = vector.broadcast %cst_44 : f32 to vector<8x128xf32>
    %187 = arith.select %13, %185, %186 : vector<8x128xi1>, vector<8x128xf32>
    %cst_45 = arith.constant dense<0xFF800000> : vector<8xf32>
    %188 = vector.multi_reduction <maximumf>, %187, %cst_45 [1] : vector<8x128xf32> to vector<8xf32>
    %189 = vector.shape_cast %188 : vector<8xf32> to vector<8x1xf32>
    %190 = vector.broadcast %189 : vector<8x1xf32> to vector<8x128xf32>
    %191 = arith.subf %187, %190 : vector<8x128xf32>
    %192 = math.exp %191 : vector<8x128xf32>
    %cst_46 = arith.constant dense<0.000000e+00> : vector<8xf32>
    %193 = vector.multi_reduction <add>, %192, %cst_46 [1] : vector<8x128xf32> to vector<8xf32>
    %194 = vector.shape_cast %193 : vector<8xf32> to vector<8x1xf32>
    %195 = tpu.reciprocal %194 {approx = true} : vector<8x1xf32> -> vector<8x1xf32>
    %196 = arith.mulf %194, %195 : vector<8x1xf32>
    %cst_47 = arith.constant 2.000000e+00 : f32
    %197 = vector.broadcast %cst_47 : f32 to vector<8x1xf32>
    %198 = arith.subf %197, %196 : vector<8x1xf32>
    %199 = arith.mulf %195, %198 : vector<8x1xf32>
    %200 = vector.broadcast %199 : vector<8x1xf32> to vector<8x128xf32>
    %201 = arith.mulf %192, %200 : vector<8x128xf32>
    %c24 = arith.constant 24 : index
    %c0_48 = arith.constant 0 : index
    %202 = vector.load %arg6[%c24, %c0_48] : memref<32x128xf32, #tpu.memory_space<vmem>>, vector<8x128xf32>
    tpu.vector_store %arg6[%c24, %c0_48], %201 {strides = array<i32>} : memref<32x128xf32, #tpu.memory_space<vmem>>, vector<8x128xf32>,
    %c0_49 = arith.constant 0 : index
    %c0_50 = arith.constant 0 : index
    %203 = vector.load %arg7[%c0_49, %c0_50] : memref<8x128xf32, #tpu.memory_space<vmem>>, vector<8x128xf32>
    tpu.vector_store %arg7[%c0_49, %c0_50], %185 {strides = array<i32>} : memref<8x128xf32, #tpu.memory_space<vmem>>, vector<8x128xf32>,
    return
  }
  func.func @transform_0(%arg0: i32) -> (i32, i32) {
    %c0_i32 = arith.constant 0 : i32
    %c0_i32_0 = arith.constant 0 : i32
    return %arg0, %c0_i32 : i32, i32
  }
  func.func @transform_1(%arg0: i32) -> (i32, i32) {
    %c0_i32 = arith.constant 0 : i32
    %c0_i32_0 = arith.constant 0 : i32
    %c0_i32_1 = arith.constant 0 : i32
    return %c0_i32, %c0_i32_0 : i32, i32
  }
  func.func @transform_2(%arg0: i32) -> (i32, i32) {
    %c0_i32 = arith.constant 0 : i32
    %c0_i32_0 = arith.constant 0 : i32
    %c0_i32_1 = arith.constant 0 : i32
    return %c0_i32, %c0_i32_0 : i32, i32
  }
  func.func @transform_3(%arg0: i32) -> (i32, i32) {
    %c0_i32 = arith.constant 0 : i32
    %c0_i32_0 = arith.constant 0 : i32
    %c0_i32_1 = arith.constant 0 : i32
    return %c0_i32, %c0_i32_0 : i32, i32
  }
  func.func @transform_4(%arg0: i32) -> (i32, i32) {
    %c0_i32 = arith.constant 0 : i32
    %c0_i32_0 = arith.constant 0 : i32
    %c0_i32_1 = arith.constant 0 : i32
    return %c0_i32, %c0_i32_0 : i32, i32
  }
  func.func @transform_5(%arg0: i32) -> (i32, i32) {
    %c0_i32 = arith.constant 0 : i32
    %c0_i32_0 = arith.constant 0 : i32
    return %arg0, %c0_i32 : i32, i32
  }
}

</mosaic_0001>

<llo_original>
// kernel: tpu_custom_call.1
$region0: #{tpu_custom_call.1}
  #allocation0 [shape = 'u32[]', space=smem, size = 0x4, offset = 0x4, fixed_abs, tag = 'smem constant byte address 0x4 - core index']
  #allocation1 [shape = 'u32[144,128]{1,0:T(1,128)}', space=vmem, size = 0x12000, scoped, tag = 'internal scratch']
  #allocation2 [shape = 'f32[8,128]{1,0:T(8,128)}', space=vmem, size = 0x1000, scoped, tag = 'scratch operand']
  %s0 = inlined_call_operand.vmem [shape: f32[64,32], index: 0, kind: input, shape index: {}]
  %s1 = inlined_call_operand.vmem [shape: f32[32,384], index: 1, kind: input, shape index: {}]
  %s2 = inlined_call_operand.hbm [shape: f32[128,384], index: 2, kind: input, shape index: {}]
  %s3 = inlined_call_operand.vmem [shape: f32[1,384], index: 3, kind: input, shape index: {}]
  %s4 = inlined_call_operand.vmem [shape: f32[1,128], index: 4, kind: input, shape index: {}]
  %s5 = inlined_call_operand.hbm [shape: f32[64,128], index: 5, kind: output, shape index: {}]
  %s6 = sld [smem:[#allocation0]]
  $region61: #{tpu_custom_call.1} parent=0
    _
  %s8 = ssub.s32 1, %s6
  %s9 = scalar_select 0, %s8, %s6
  $region1: #{tpu_custom_call.1} parent=0
    #allocation3 [shape = 'u8[196608]{0}', space=vmem, size = 0x30000, scoped, tag = 'input window, operand 2, single buffered']
    #allocation4 [shape = 's32[2]{0}', space=sflag, size = 0x8, scoped, tag = 'scoped memory for tpu_custom_call.1']
    #allocation5 [shape = 's32[2]{0}', space=sflag, size = 0x8, scoped, tag = 'scoped memory for tpu_custom_call.1']
    #allocation6 [shape = 'u8[32768]{0}', space=vmem, size = 0x8000, scoped, tag = 'output window, operand 0']
    %10 = vsyncpa [#allocation4], 0
    %11 = vsyncpa [#allocation5], 0
    %s12 = scalar_lea.sflag [#allocation5], 1
    %13 = vsyncpa %s12, 0
    loop: start=0, step=1, limit=4
    $region2: #{tpu_custom_call.1} parent=1 // loop_pre_header
      _
    $region3: #{tpu_custom_call.1} parent=1 // loop_header
      %s15 = sphi 0, %s19
      %p16 = scmp.ge.s32.totalorder %s15, 4
      %s25 = sphi 0, %s27
      %s28 = sphi 0, %s25
      %s29 = sphi 0, %s28
      %s45 = sphi 0, %s29
      %s49 = sphi 0, %s49
      %s51 = sphi 0, %s49
      %s52 = sphi 0, %s51
      %s66 = sphi 0, %s52
      %s70 = sphi 0, %s70
      %s72 = sphi 0, %s70
      %s73 = sphi 0, %s72
      %s87 = sphi 0, %s73
      %s91 = sphi 0, %s91
      %s93 = sphi 0, %s91
      %s94 = sphi 0, %s93
      %s108 = sphi 0, %s94
      %s112 = sphi 0, %s112
      %s114 = sphi 0, %s112
      %s115 = sphi 0, %s114
      %s129 = sphi 0, %s115
      %s135 = sphi 0, %s137
      %s138 = sphi 0, %s135
      %s139 = sphi 0, %s138
      %s155 = sphi 0, %s139
    $region4: #{tpu_custom_call.1} parent=1 // loop_header_branch
      %18 = sbr.rel (%p16) target = $region8
    $region5: #{tpu_custom_call.1} parent=1 // loop_body
      %s20 = ssub.s32 %s15, 1
      %s21 = ssub.s32 %s15, 2
      %s22 = sadd.s32 %s15, 1
      %s23 = ssub.s32 %s15, %s22
      %p24 = scmp.eq.s32.totalorder %s23, 0
      %s26 = sadd.s32 %s25, 1
      %s27 = scalar_select %p24, %s25, %s26
      %p30 = pneg %p24
      %p31 = scmp.eq.s32.totalorder %s15, 1
      %p32 = por %p30, %p31
      %p33 = scmp.ne.s32.totalorder %s25, %s28
      %p34 = scmp.eq.s32.totalorder %s15, 0
      %p35 = por %p33, %p34
      %p36 = scmp.ne.s32.totalorder %s25, %s28
      %p37 = scmp.eq.s32.totalorder %s20, 1
      %p38 = por %p36, %p37
      %p39 = scmp.ne.s32.totalorder %s28, %s29
      %p40 = scmp.eq.s32.totalorder %s20, 0
      %p41 = por %p39, %p40
      %p42 = scmp.ne.s32.totalorder %s28, %s29
      %p43 = scmp.eq.s32.totalorder %s21, 1
      %p44 = por %p42, %p43
      %p46 = scmp.ne.s32.totalorder %s29, %s45
      %p47 = scmp.eq.s32.totalorder %s21, 0
      %p48 = por %p46, %p47
      %s50 = sadd.s32 %s49, 1
      %p53 = scmp.eq.s32.totalorder %s15, 1
      %p54 = scmp.ne.s32.totalorder %s49, %s51
      %p55 = scmp.eq.s32.totalorder %s15, 0
      %p56 = por %p54, %p55
      %p57 = scmp.ne.s32.totalorder %s49, %s51
      %p58 = scmp.eq.s32.totalorder %s20, 1
      %p59 = por %p57, %p58
      %p60 = scmp.ne.s32.totalorder %s51, %s52
      %p61 = scmp.eq.s32.totalorder %s20, 0
      %p62 = por %p60, %p61
      %p63 = scmp.ne.s32.totalorder %s51, %s52
      %p64 = scmp.eq.s32.totalorder %s21, 1
      %p65 = por %p63, %p64
      %p67 = scmp.ne.s32.totalorder %s52, %s66
      %p68 = scmp.eq.s32.totalorder %s21, 0
      %p69 = por %p67, %p68
      %s71 = sadd.s32 %s70, 1
      %p74 = scmp.eq.s32.totalorder %s15, 1
      %p75 = scmp.ne.s32.totalorder %s70, %s72
      %p76 = scmp.eq.s32.totalorder %s15, 0
      %p77 = por %p75, %p76
      %p78 = scmp.ne.s32.totalorder %s70, %s72
      %p79 = scmp.eq.s32.totalorder %s20, 1
      %p80 = por %p78, %p79
      %p81 = scmp.ne.s32.totalorder %s72, %s73
      %p82 = scmp.eq.s32.totalorder %s20, 0
      %p83 = por %p81, %p82
      %p84 = scmp.ne.s32.totalorder %s72, %s73
      %p85 = scmp.eq.s32.totalorder %s21, 1
      %p86 = por %p84, %p85
      %p88 = scmp.ne.s32.totalorder %s73, %s87
      %p89 = scmp.eq.s32.totalorder %s21, 0
      %p90 = por %p88, %p89
      %s92 = sadd.s32 %s91, 1
      %p95 = scmp.eq.s32.totalorder %s15, 1
      %p96 = scmp.ne.s32.totalorder %s91, %s93
      %p97 = scmp.eq.s32.totalorder %s15, 0
      %p98 = por %p96, %p97
      %p99 = scmp.ne.s32.totalorder %s91, %s93
      %p100 = scmp.eq.s32.totalorder %s20, 1
      %p101 = por %p99, %p100
      %p102 = scmp.ne.s32.totalorder %s93, %s94
      %p103 = scmp.eq.s32.totalorder %s20, 0
      %p104 = por %p102, %p103
      %p105 = scmp.ne.s32.totalorder %s93, %s94
      %p106 = scmp.eq.s32.totalorder %s21, 1
      %p107 = por %p105, %p106
      %p109 = scmp.ne.s32.totalorder %s94, %s108
      %p110 = scmp.eq.s32.totalorder %s21, 0
      %p111 = por %p109, %p110
      %s113 = sadd.s32 %s112, 1
      %p116 = scmp.eq.s32.totalorder %s15, 1
      %p117 = scmp.ne.s32.totalorder %s112, %s114
      %p118 = scmp.eq.s32.totalorder %s15, 0
      %p119 = por %p117, %p118
      %p120 = scmp.ne.s32.totalorder %s112, %s114
      %p121 = scmp.eq.s32.totalorder %s20, 1
      %p122 = por %p120, %p121
      %p123 = scmp.ne.s32.totalorder %s114, %s115
      %p124 = scmp.eq.s32.totalorder %s20, 0
      %p125 = por %p123, %p124
      %p126 = scmp.ne.s32.totalorder %s114, %s115
      %p127 = scmp.eq.s32.totalorder %s21, 1
      %p128 = por %p126, %p127
      %p130 = scmp.ne.s32.totalorder %s115, %s129
      %p131 = scmp.eq.s32.totalorder %s21, 0
      %p132 = por %p130, %p131
      %s133 = ssub.s32 %s15, %s22
      %p134 = scmp.eq.s32.totalorder %s133, 0
      %s136 = sadd.s32 %s135, 1
      %s137 = scalar_select %p134, %s135, %s136
      %p140 = pneg %p134
      %p141 = scmp.eq.s32.totalorder %s15, 1
      %p142 = por %p140, %p141
      %p143 = scmp.ne.s32.totalorder %s135, %s138
      %p144 = scmp.eq.s32.totalorder %s15, 0
      %p145 = por %p143, %p144
      %p146 = scmp.ne.s32.totalorder %s135, %s138
      %p147 = scmp.eq.s32.totalorder %s20, 1
      %p148 = por %p146, %p147
      %p149 = scmp.ne.s32.totalorder %s138, %s139
      %p150 = scmp.eq.s32.totalorder %s20, 0
      %p151 = por %p149, %p150
      %p152 = scmp.ne.s32.totalorder %s138, %s139
      %p153 = scmp.eq.s32.totalorder %s21, 1
      %p154 = por %p152, %p153
      %p156 = scmp.ne.s32.totalorder %s139, %s155
      %p157 = scmp.eq.s32.totalorder %s21, 0
      %p158 = por %p156, %p157
      %p159 = scmp.le.s32.totalorder 1, %s15
      %p160 = scmp.lt.s32.totalorder %s15, 3
      %p161 = pnand %p159, %p160
      %p162 = pneg %p161
      // Predicated region
      $region9: #{tpu_custom_call.1} parent=5 // pred_check
        _
      $region10: #{tpu_custom_call.1} parent=5 // pred_check_branch
        %164 = sbr.rel (%p161) target = $region12
      $region11: #{tpu_custom_call.1} parent=5 // pred_region
        %s165 = ssub.s32 %s15, 1
        // Predicated region
        $region13: #{tpu_custom_call.1} parent=11 // pred_check
          %p166 = pneg %p62
        $region14: #{tpu_custom_call.1} parent=11 // pred_check_branch
          %168 = sbr.rel (%p166) target = $region16
        $region15: #{tpu_custom_call.1} parent=11 // pred_region
          _
        $region16: #{tpu_custom_call.1} parent=11 // pred_fallthru
          _
        // Predicated region
        $region17: #{tpu_custom_call.1} parent=11 // pred_check
          %p169 = pneg %p83
        $region18: #{tpu_custom_call.1} parent=11 // pred_check_branch
          %171 = sbr.rel (%p169) target = $region20
        $region19: #{tpu_custom_call.1} parent=11 // pred_region
          %s173 = ssub.s32 6144, 6144
          %174 = vsyncadd [#allocation4], %s173
          %s175 = sshll.u32 [#allocation3], 4
          %s176 = int_to_ptr.vmem [resolvable:$true] %s175
          %181 = dma.hbm_to_vmem [thread:$0]  %s2, 6144, %s176, [#allocation4], 384, 384, 24
        $region20: #{tpu_custom_call.1} parent=11 // pred_fallthru
          _
        // Predicated region
        $region21: #{tpu_custom_call.1} parent=11 // pred_check
          %p182 = pneg %p104
        $region22: #{tpu_custom_call.1} parent=11 // pred_check_branch
          %184 = sbr.rel (%p182) target = $region24
        $region23: #{tpu_custom_call.1} parent=11 // pred_region
          _
        $region24: #{tpu_custom_call.1} parent=11 // pred_fallthru
          _
        // Predicated region
        $region25: #{tpu_custom_call.1} parent=11 // pred_check
          %p185 = pneg %p125
        $region26: #{tpu_custom_call.1} parent=11 // pred_check_branch
          %187 = sbr.rel (%p185) target = $region28
        $region27: #{tpu_custom_call.1} parent=11 // pred_region
          _
        $region28: #{tpu_custom_call.1} parent=11 // pred_fallthru
          _
      $region12: #{tpu_custom_call.1} parent=5 // pred_fallthru
        _
      %p188 = scmp.lt.s32.totalorder %s15, 2
      // Predicated region
      $region29: #{tpu_custom_call.1} parent=5 // pred_check
        %p189 = pneg %p188
      $region30: #{tpu_custom_call.1} parent=5 // pred_check_branch
        %191 = sbr.rel (%p189) target = $region32
      $region31: #{tpu_custom_call.1} parent=5 // pred_region
        // Predicated region
        $region33: #{tpu_custom_call.1} parent=31 // pred_check
          %p192 = pneg %p35
        $region34: #{tpu_custom_call.1} parent=31 // pred_check_branch
          %194 = sbr.rel (%p192) target = $region36
        $region35: #{tpu_custom_call.1} parent=31 // pred_region
          %s195 = smul.u32 4, %s15
          %p196 = scmp.lt.s32.totalorder %s195, 7
          %s197 = scalar_select %p196, %s195, 7
          %s198 = smul.addr %s197, 8
          %s199 = scalar_lea.vmem %s0, %s198
          %s200 = smul.u32 4, %s15
        $region36: #{tpu_custom_call.1} parent=31 // pred_fallthru
          _
      $region32: #{tpu_custom_call.1} parent=5 // pred_fallthru
        _
      %p201 = scmp.le.s32.totalorder 1, %s15
      %p202 = scmp.lt.s32.totalorder %s15, 3
      %p203 = pnand %p201, %p202
      %p204 = pneg %p203
      // Predicated region
      $region37: #{tpu_custom_call.1} parent=5 // pred_check
        _
      $region38: #{tpu_custom_call.1} parent=5 // pred_check_branch
        %206 = sbr.rel (%p203) target = $region40
      $region39: #{tpu_custom_call.1} parent=5 // pred_region
        %s207 = ssub.s32 %s15, 1
        // Predicated region
        $region41: #{tpu_custom_call.1} parent=39 // pred_check
          %p208 = pneg %p83
        $region42: #{tpu_custom_call.1} parent=39 // pred_check_branch
          %210 = sbr.rel (%p208) target = $region44
        $region43: #{tpu_custom_call.1} parent=39 // pred_region
          %211 = dma.done [#allocation4], 6144
        $region44: #{tpu_custom_call.1} parent=39 // pred_fallthru
          _
        %s212 = smul.u32 4, %s20
        %p213 = scmp.lt.s32.totalorder %s212, 7
        %s214 = scalar_select %p213, %s212, 7
        %s215 = smul.addr %s214, 8
        %s216 = scalar_lea.vmem %s0, %s215
        %p217 = pneg %p41
        %p218 = pneg %p38
        %p219 = pneg %p62
        %p220 = pneg %p59
        %p221 = pneg %p83
        %p222 = pneg %p80
        %p223 = pneg %p104
        %p224 = pneg %p101
        %p225 = pneg %p125
        %p226 = pneg %p122
        %p227 = pneg %p151
        %p228 = pneg %p148
        %s229 = sand.u32 %s138, 1
        %s230 = scalar_lea.sflag [#allocation5], %s229
        %s231 = sand.u32 %s138, 1
        %s232 = smul.addr %s231, 32
        %s233 = scalar_lea.vmem [#allocation6], %s232
        %s234 = smul.u32 4, %s20
        %p235 = scmp.lt.s32.totalorder %s234, 7
        %s236 = scalar_select %p235, %s234, 7
        %s237 = smul.addr %s236, 8
        %s238 = scalar_lea.vmem %s0, %s237
        %s239 = smul.u32 4, %s20
        %s240 = smul.u32 4, %s20
        %p241 = scmp.eq.s32.totalorder %s20, 0
        // Predicated region
        $region45: #{tpu_custom_call.1} parent=39 // pred_check
          %p242 = pneg %p241
        $region46: #{tpu_custom_call.1} parent=39 // pred_check_branch
          %244 = sbr.rel (%p242) target = $region48
        $region47: #{tpu_custom_call.1} parent=39 // pred_region
          %245 = vst [vmem:[#allocation2] sm:$0xff] 0.0
        $region48: #{tpu_custom_call.1} parent=39 // pred_fallthru
          _
        %v246 = vld [vmem:[%s238] sm:$0xff]
        %v247 = vld [vmem:[%s238 + $0x8] sm:$0xff]
        %v248 = vld [vmem:[%s238 + $0x10] sm:$0xff]
        %v249 = vld [vmem:[%s238 + $0x18] sm:$0xff]
        %v250 = vld [vmem:[%s1] sm:$0xff]
        %v251 = vld [vmem:[%s1 + $0x8] sm:$0xff]
        %v252 = vld [vmem:[%s1 + $0x10] sm:$0xff]
        %v253 = vld [vmem:[%s1 + $0x18] sm:$0xff]
        %v254 = vld [vmem:[%s1 + $0x20] sm:$0xff]
        %v255 = vld [vmem:[%s1 + $0x28] sm:$0xff]
        %v256 = vld [vmem:[%s1 + $0x30] sm:$0xff]
        %v257 = vld [vmem:[%s1 + $0x38] sm:$0xff]
        %v258 = vld [vmem:[%s1 + $0x40] sm:$0xff]
        %v259 = vld [vmem:[%s1 + $0x48] sm:$0xff]
        %v260 = vld [vmem:[%s1 + $0x50] sm:$0xff]
        %v261 = vld [vmem:[%s1 + $0x58] sm:$0xff]
        %v262 = vld [vmem:[%s3] sm:$0x7]
        %v264 = vlaneseq
        %v265 = vshrl.u32 %v264, 7
        %v266 = vsub.s32 0, %v265
        %v267 = vrot.slane %v262, %v266
        %v268 = vlaneseq
        %v269 = vshrl.u32 %v268, 7
        %v270 = vsub.s32 1, %v269
        %v271 = vrot.slane %v262, %v270
        %v272 = vlaneseq
        %v273 = vshrl.u32 %v272, 7
        %v274 = vsub.s32 2, %v273
        %v275 = vrot.slane %v262, %v274
        %vm279 = vcmask 261120
        %v281 = vsel %vm279, %v246, 0
        %v284 = vsel %vm279, %v247, 0
        %v287 = vsel %vm279, %v248, 0
        %v290 = vsel %vm279, %v249, 0
        %292 = vmatprep.subr.mxu0 %v251
        %293 = vmatpush1.msra.mxu0 %v250
        %294 = vmatprep.subr.mxu0 %v254
        %295 = vmatpush1.msra.mxu0 %v253
        %296 = vmatprep.subr.mxu0 %v257
        %297 = vmatpush1.msra.mxu0 %v256
        %298 = vmatprep.subr.mxu0 %v260
        %299 = vmatpush1.msra.mxu0 %v259
        %300 = vmatprep.subr.mxu0 0.0
        %301 = vmatpush1.msra.mxu0 0.0
        %302 = vmatprep.subr.mxu0 0.0
        %303 = vmatpush1.msra.mxu0 0.0
        %304 = vmatprep.subr.mxu0 0.0
        %305 = vmatpush1.msra.mxu0 0.0
        %306 = vmatprep.subr.mxu0 0.0
        %307 = vmatpush1.msra.mxu0 0.0
        %308 = vmatprep.subr.mxu0 0.0
        %309 = vmatpush1.msra.mxu0 0.0
        %310 = vmatprep.subr.mxu0 0.0
        %311 = vmatpush1.msra.mxu0 0.0
        %312 = vmatprep.subr.mxu0 0.0
        %313 = vmatpush1.msra.mxu0 0.0
        %314 = vmatprep.subr.mxu0 0.0
        %315 = vmatpush1.msra.mxu0 0.0
        %316 = vmatprep.subr.mxu0 0.0
        %317 = vmatpush1.msra.mxu0 0.0
        %318 = vmatprep.subr.mxu0 0.0
        %319 = vmatpush1.msra.mxu0 0.0
        %320 = vmatprep.subr.mxu0 0.0
        %321 = vmatpush1.msra.mxu0 0.0
        %322 = vmatprep.subr.mxu0 0.0
        %323 = vmatpush1.msra.mxu0 0.0
        %324 = vmatprep.subr.mxu0 0.0
        %325 = vmatpush1.msra.mxu0 0.0
        %326 = vmatprep.subr.mxu0 0.0
        %327 = vmatpush1.msra.mxu0 0.0
        %328 = vmatprep.subr.mxu0 0.0
        %329 = vmatpush1.msra.mxu0 0.0
        %330 = vmatprep.subr.mxu0 0.0
        %331 = vmatpush1.msra.mxu0 0.0
        %332 = vmatprep.subr.mxu0 0.0
        %333 = vmatpush1.msra.mxu0 0.0
        %334 = vmatprep.subr.mxu0 0.0
        %335 = vmatpush1.msra.mxu0 0.0
        %336 = vmatprep.subr.mxu0 0.0
        %337 = vmatpush1.msra.mxu0 0.0
        %338 = vmatprep.subr.mxu0 0.0
        %339 = vmatpush1.msra.mxu0 0.0
        %340 = vmatprep.subr.mxu0 0.0
        %341 = vmatpush1.msra.mxu0 0.0
        %342 = vmatprep.subr.mxu0 0.0
        %343 = vmatpush1.msra.mxu0 0.0
        %344 = vmatprep.subr.mxu0 0.0
        %345 = vmatpush1.msra.mxu0 0.0
        %346 = vmatprep.subr.mxu0 0.0
        %347 = vmatpush1.msra.mxu0 0.0
        %348 = vmatprep.subr.mxu0 0.0
        %349 = vmatpush1.msra.mxu0 0.0
        %350 = vmatprep.subr.mxu0 0.0
        %351 = vmatpush1.msra.mxu0 0.0
        %352 = vmatprep.subr.mxu0 0.0
        %353 = vmatpush1.msra.mxu0 0.0
        %354 = vmatprep.subr.mxu0 0.0
        %355 = vmatpush1.msra.mxu0 0.0
        %356 = vmatprep.mubr.f32.mxu0 0.0
        %357 = vmatmul.mubr.f32.gmra.mrb[0].mxu0 %v281
        %v358 = vpop.f32.mrb[0].mxu0
        %v359 = vadd.f32 %v267, %v358
        %v360 = vpop.f32.mrb[0].mxu0
        %v361 = vadd.f32 %v271, %v360
        %362 = vmatprep.mubr.f32.mxu0 0.0
        %363 = vmatmul.mubr.f32.gmra.mrb[0].mxu0 %v284
        %v364 = vpop.f32.mrb[0].mxu0
        %v365 = vadd.f32 %v267, %v364
        %v366 = vpop.f32.mrb[0].mxu0
        %v367 = vadd.f32 %v271, %v366
        %368 = vmatprep.mubr.f32.mxu0 0.0
        %369 = vmatmul.mubr.f32.gmra.mrb[0].mxu0 %v287
        %v370 = vpop.f32.mrb[0].mxu0
        %v371 = vadd.f32 %v267, %v370
        %v372 = vpop.f32.mrb[0].mxu0
        %v373 = vadd.f32 %v271, %v372
        %374 = vmatprep.mubr.f32.mxu0 0.0
        %375 = vmatmul.mubr.f32.gmra.mrb[0].mxu0 %v290
        %v376 = vpop.f32.mrb[0].mxu0
        %v377 = vadd.f32 %v267, %v376
        %v378 = vpop.f32.mrb[0].mxu0
        %v379 = vadd.f32 %v271, %v378
        %380 = vdwg.mxu0
        %381 = vmatprep.subr.mxu0 0.0
        %382 = vmatpush1.msra.mxu0 %v252
        %383 = vmatprep.subr.mxu0 0.0
        %384 = vmatpush1.msra.mxu0 %v255
        %385 = vmatprep.subr.mxu0 0.0
        %386 = vmatpush1.msra.mxu0 %v258
        %387 = vmatprep.subr.mxu0 0.0
        %388 = vmatpush1.msra.mxu0 %v261
        %389 = vmatprep.subr.mxu0 0.0
        %390 = vmatpush1.msra.mxu0 0.0
        %391 = vmatprep.subr.mxu0 0.0
        %392 = vmatpush1.msra.mxu0 0.0
        %393 = vmatprep.subr.mxu0 0.0
        %394 = vmatpush1.msra.mxu0 0.0
        %395 = vmatprep.subr.mxu0 0.0
        %396 = vmatpush1.msra.mxu0 0.0
        %397 = vmatprep.subr.mxu0 0.0
        %398 = vmatpush1.msra.mxu0 0.0
        %399 = vmatprep.subr.mxu0 0.0
        %400 = vmatpush1.msra.mxu0 0.0
        %401 = vmatprep.subr.mxu0 0.0
        %402 = vmatpush1.msra.mxu0 0.0
        %403 = vmatprep.subr.mxu0 0.0
        %404 = vmatpush1.msra.mxu0 0.0
        %405 = vmatprep.subr.mxu0 0.0
        %406 = vmatpush1.msra.mxu0 0.0
        %407 = vmatprep.subr.mxu0 0.0
        %408 = vmatpush1.msra.mxu0 0.0
        %409 = vmatprep.subr.mxu0 0.0
        %410 = vmatpush1.msra.mxu0 0.0
        %411 = vmatprep.subr.mxu0 0.0
        %412 = vmatpush1.msra.mxu0 0.0
        %413 = vmatprep.subr.mxu0 0.0
        %414 = vmatpush1.msra.mxu0 0.0
        %415 = vmatprep.subr.mxu0 0.0
        %416 = vmatpush1.msra.mxu0 0.0
        %417 = vmatprep.subr.mxu0 0.0
        %418 = vmatpush1.msra.mxu0 0.0
        %419 = vmatprep.subr.mxu0 0.0
        %420 = vmatpush1.msra.mxu0 0.0
        %421 = vmatprep.subr.mxu0 0.0
        %422 = vmatpush1.msra.mxu0 0.0
        %423 = vmatprep.subr.mxu0 0.0
        %424 = vmatpush1.msra.mxu0 0.0
        %425 = vmatprep.subr.mxu0 0.0
        %426 = vmatpush1.msra.mxu0 0.0
        %427 = vmatprep.subr.mxu0 0.0
        %428 = vmatpush1.msra.mxu0 0.0
        %429 = vmatprep.subr.mxu0 0.0
        %430 = vmatpush1.msra.mxu0 0.0
        %431 = vmatprep.subr.mxu0 0.0
        %432 = vmatpush1.msra.mxu0 0.0
        %433 = vmatprep.subr.mxu0 0.0
        %434 = vmatpush1.msra.mxu0 0.0
        %435 = vmatprep.subr.mxu0 0.0
        %436 = vmatpush1.msra.mxu0 0.0
        %437 = vmatprep.subr.mxu0 0.0
        %438 = vmatpush1.msra.mxu0 0.0
        %439 = vmatprep.subr.mxu0 0.0
        %440 = vmatpush1.msra.mxu0 0.0
        %441 = vmatprep.subr.mxu0 0.0
        %442 = vmatpush1.msra.mxu0 0.0
        %443 = vmatprep.subr.mxu0 0.0
        %444 = vmatpush1.msra.mxu0 0.0
        %445 = vmatprep.mubr.f32.mxu0 0.0
        %446 = vmatmul.mubr.f32.gmra.mrb[0].mxu0 %v281
        %v447 = vpop.f32.mrb[0].mxu0
        %v448 = vadd.f32 %v275, %v447
        %v449 = vpop.f32.mrb[0].mxu0
        %450 = vmatprep.mubr.f32.mxu0 0.0
        %451 = vmatmul.mubr.f32.gmra.mrb[0].mxu0 %v284
        %v452 = vpop.f32.mrb[0].mxu0
        %v453 = vadd.f32 %v275, %v452
        %v454 = vpop.f32.mrb[0].mxu0
        %455 = vmatprep.mubr.f32.mxu0 0.0
        %456 = vmatmul.mubr.f32.gmra.mrb[0].mxu0 %v287
        %v457 = vpop.f32.mrb[0].mxu0
        %v458 = vadd.f32 %v275, %v457
        %v459 = vpop.f32.mrb[0].mxu0
        %460 = vmatprep.mubr.f32.mxu0 0.0
        %461 = vmatmul.mubr.f32.gmra.mrb[0].mxu0 %v290
        %v462 = vpop.f32.mrb[0].mxu0
        %v463 = vadd.f32 %v275, %v462
        %v464 = vpop.f32.mrb[0].mxu0
        %465 = vdwg.mxu0
        %v466 = vld [vmem:[#allocation3] sm:$0xff]
        %v467 = vld [vmem:[#allocation3 + $0x8] sm:$0xff]
        %v468 = vld [vmem:[#allocation3 + $0x10] sm:$0xff]
        %v469 = vld [vmem:[#allocation3 + $0x18] sm:$0xff]
        %v470 = vld [vmem:[#allocation3 + $0x20] sm:$0xff]
        %v471 = vld [vmem:[#allocation3 + $0x28] sm:$0xff]
        %v472 = vld [vmem:[#allocation3 + $0x30] sm:$0xff]
        %v473 = vld [vmem:[#allocation3 + $0x38] sm:$0xff]
        %v474 = vld [vmem:[#allocation3 + $0x40] sm:$0xff]
        %v475 = vld [vmem:[#allocation3 + $0x48] sm:$0xff]
        %v476 = vld [vmem:[#allocation3 + $0x50] sm:$0xff]
        %v477 = vld [vmem:[#allocation3 + $0x58] sm:$0xff]
        %v478 = vld [vmem:[#allocation3 + $0x60] sm:$0xff]
        %v479 = vld [vmem:[#allocation3 + $0x68] sm:$0xff]
        %v480 = vld [vmem:[#allocation3 + $0x70] sm:$0xff]
        %v481 = vld [vmem:[#allocation3 + $0x78] sm:$0xff]
        %v482 = vld [vmem:[#allocation3 + $0x80] sm:$0xff]
        %v483 = vld [vmem:[#allocation3 + $0x88] sm:$0xff]
        %v484 = vld [vmem:[#allocation3 + $0x90] sm:$0xff]
        %v485 = vld [vmem:[#allocation3 + $0x98] sm:$0xff]
        %v486 = vld [vmem:[#allocation3 + $0xa0] sm:$0xff]
        %v487 = vld [vmem:[#allocation3 + $0xa8] sm:$0xff]
        %v488 = vld [vmem:[#allocation3 + $0xb0] sm:$0xff]
        %v489 = vld [vmem:[#allocation3 + $0xb8] sm:$0xff]
        %v490 = vld [vmem:[#allocation3 + $0xc0] sm:$0xff]
        %v491 = vld [vmem:[#allocation3 + $0xc8] sm:$0xff]
        %v492 = vld [vmem:[#allocation3 + $0xd0] sm:$0xff]
        %v493 = vld [vmem:[#allocation3 + $0xd8] sm:$0xff]
        %v494 = vld [vmem:[#allocation3 + $0xe0] sm:$0xff]
        %v495 = vld [vmem:[#allocation3 + $0xe8] sm:$0xff]
        %v496 = vld [vmem:[#allocation3 + $0xf0] sm:$0xff]
        %v497 = vld [vmem:[#allocation3 + $0xf8] sm:$0xff]
        %v498 = vld [vmem:[#allocation3 + $0x100] sm:$0xff]
        %v499 = vld [vmem:[#allocation3 + $0x108] sm:$0xff]
        %v500 = vld [vmem:[#allocation3 + $0x110] sm:$0xff]
        %v501 = vld [vmem:[#allocation3 + $0x118] sm:$0xff]
        %v502 = vld [vmem:[#allocation3 + $0x120] sm:$0xff]
        %v503 = vld [vmem:[#allocation3 + $0x128] sm:$0xff]
        %v504 = vld [vmem:[#allocation3 + $0x130] sm:$0xff]
        %v505 = vld [vmem:[#allocation3 + $0x138] sm:$0xff]
        %v506 = vld [vmem:[#allocation3 + $0x140] sm:$0xff]
        %v507 = vld [vmem:[#allocation3 + $0x148] sm:$0xff]
        %v508 = vld [vmem:[#allocation3 + $0x150] sm:$0xff]
        %v509 = vld [vmem:[#allocation3 + $0x158] sm:$0xff]
        %v510 = vld [vmem:[#allocation3 + $0x160] sm:$0xff]
        %v511 = vld [vmem:[#allocation3 + $0x168] sm:$0xff]
        %v512 = vld [vmem:[#allocation3 + $0x170] sm:$0xff]
        %v513 = vld [vmem:[#allocation3 + $0x178] sm:$0xff]
        %v514 = vld [vmem:[%s4] sm:$0x1]
        %v515 = vlaneseq
        %v516 = vand.u32 %v515, 127
        %vm517 = vcmp.lt.s32.totalorder %v516, 29
        %v518 = vld [vmem:[#allocation2] sm:$0xff]
        %519 = vmatprep.subr.mxu0 %v467
        %520 = vmatpush1.msra.mxu0 %v466
        %521 = vmatprep.subr.mxu0 %v470
        %522 = vmatpush1.msra.mxu0 %v469
        %523 = vmatprep.subr.mxu0 %v473
        %524 = vmatpush1.msra.mxu0 %v472
        %525 = vmatprep.subr.mxu0 %v476
        %526 = vmatpush1.msra.mxu0 %v475
        %527 = vmatprep.subr.mxu0 %v479
        %528 = vmatpush1.msra.mxu0 %v478
        %529 = vmatprep.subr.mxu0 %v482
        %530 = vmatpush1.msra.mxu0 %v481
        %531 = vmatprep.subr.mxu0 %v485
        %532 = vmatpush1.msra.mxu0 %v484
        %533 = vmatprep.subr.mxu0 %v488
        %534 = vmatpush1.msra.mxu0 %v487
        %535 = vmatprep.subr.mxu0 %v491
        %536 = vmatpush1.msra.mxu0 %v490
        %537 = vmatprep.subr.mxu0 %v494
        %538 = vmatpush1.msra.mxu0 %v493
        %539 = vmatprep.subr.mxu0 %v497
        %540 = vmatpush1.msra.mxu0 %v496
        %541 = vmatprep.subr.mxu0 %v500
        %542 = vmatpush1.msra.mxu0 %v499
        %543 = vmatprep.subr.mxu0 %v503
        %544 = vmatpush1.msra.mxu0 %v502
        %545 = vmatprep.subr.mxu0 %v506
        %546 = vmatpush1.msra.mxu0 %v505
        %547 = vmatprep.subr.mxu0 %v509
        %548 = vmatpush1.msra.mxu0 %v508
        %549 = vmatprep.subr.mxu0 %v512
        %550 = vmatpush1.msra.mxu0 %v511
        %551 = vmatprep.subr.mxu0 0.0
        %552 = vmatpush1.msra.mxu0 0.0
        %553 = vmatprep.subr.mxu0 0.0
        %554 = vmatpush1.msra.mxu0 0.0
        %555 = vmatprep.subr.mxu0 0.0
        %556 = vmatpush1.msra.mxu0 0.0
        %557 = vmatprep.subr.mxu0 0.0
        %558 = vmatpush1.msra.mxu0 0.0
        %559 = vmatprep.subr.mxu0 0.0
        %560 = vmatpush1.msra.mxu0 0.0
        %561 = vmatprep.subr.mxu0 0.0
        %562 = vmatpush1.msra.mxu0 0.0
        %563 = vmatprep.subr.mxu0 0.0
        %564 = vmatpush1.msra.mxu0 0.0
        %565 = vmatprep.subr.mxu0 0.0
        %566 = vmatpush1.msra.mxu0 0.0
        %567 = vmatprep.subr.mxu0 0.0
        %568 = vmatpush1.msra.mxu0 0.0
        %569 = vmatprep.subr.mxu0 0.0
        %570 = vmatpush1.msra.mxu0 0.0
        %571 = vmatprep.subr.mxu0 0.0
        %572 = vmatpush1.msra.mxu0 0.0
        %573 = vmatprep.subr.mxu0 0.0
        %574 = vmatpush1.msra.mxu0 0.0
        %575 = vmatprep.subr.mxu0 0.0
        %576 = vmatpush1.msra.mxu0 0.0
        %577 = vmatprep.subr.mxu0 0.0
        %578 = vmatpush1.msra.mxu0 0.0
        %579 = vmatprep.subr.mxu0 0.0
        %580 = vmatpush1.msra.mxu0 0.0
        %581 = vmatprep.subr.mxu0 0.0
        %582 = vmatpush1.msra.mxu0 0.0
        %583 = vmatprep.mubr.f32.mxu0 0.0
        %584 = vmatmul.mubr.f32.gmra.mrb[0].mxu0 %v518
        %v585 = vpop.f32.mrb[0].mxu0
        %v586 = vadd.f32 0.0, %v585
        %v587 = vpop.f32.mrb[0].mxu0
        %v588 = vadd.f32 0.0, %v587
        %589 = vdwg.mxu0
        %590 = vmatprep.subr.mxu0 0.0
        %591 = vmatpush1.msra.mxu0 %v468
        %592 = vmatprep.subr.mxu0 0.0
        %593 = vmatpush1.msra.mxu0 %v471
        %594 = vmatprep.subr.mxu0 0.0
        %595 = vmatpush1.msra.mxu0 %v474
        %596 = vmatprep.subr.mxu0 0.0
        %597 = vmatpush1.msra.mxu0 %v477
        %598 = vmatprep.subr.mxu0 0.0
        %599 = vmatpush1.msra.mxu0 %v480
        %600 = vmatprep.subr.mxu0 0.0
        %601 = vmatpush1.msra.mxu0 %v483
        %602 = vmatprep.subr.mxu0 0.0
        %603 = vmatpush1.msra.mxu0 %v486
        %604 = vmatprep.subr.mxu0 0.0
        %605 = vmatpush1.msra.mxu0 %v489
        %606 = vmatprep.subr.mxu0 0.0
        %607 = vmatpush1.msra.mxu0 %v492
        %608 = vmatprep.subr.mxu0 0.0
        %609 = vmatpush1.msra.mxu0 %v495
        %610 = vmatprep.subr.mxu0 0.0
        %611 = vmatpush1.msra.mxu0 %v498
        %612 = vmatprep.subr.mxu0 0.0
        %613 = vmatpush1.msra.mxu0 %v501
        %614 = vmatprep.subr.mxu0 0.0
        %615 = vmatpush1.msra.mxu0 %v504
        %616 = vmatprep.subr.mxu0 0.0
        %617 = vmatpush1.msra.mxu0 %v507
        %618 = vmatprep.subr.mxu0 0.0
        %619 = vmatpush1.msra.mxu0 %v510
        %620 = vmatprep.subr.mxu0 0.0
        %621 = vmatpush1.msra.mxu0 %v513
        %622 = vmatprep.subr.mxu0 0.0
        %623 = vmatpush1.msra.mxu0 0.0
        %624 = vmatprep.subr.mxu0 0.0
        %625 = vmatpush1.msra.mxu0 0.0
        %626 = vmatprep.subr.mxu0 0.0
        %627 = vmatpush1.msra.mxu0 0.0
        %628 = vmatprep.subr.mxu0 0.0
        %629 = vmatpush1.msra.mxu0 0.0
        %630 = vmatprep.subr.mxu0 0.0
        %631 = vmatpush1.msra.mxu0 0.0
        %632 = vmatprep.subr.mxu0 0.0
        %633 = vmatpush1.msra.mxu0 0.0
        %634 = vmatprep.subr.mxu0 0.0
        %635 = vmatpush1.msra.mxu0 0.0
        %636 = vmatprep.subr.mxu0 0.0
        %637 = vmatpush1.msra.mxu0 0.0
        %638 = vmatprep.subr.mxu0 0.0
        %639 = vmatpush1.msra.mxu0 0.0
        %640 = vmatprep.subr.mxu0 0.0
        %641 = vmatpush1.msra.mxu0 0.0
        %642 = vmatprep.subr.mxu0 0.0
        %643 = vmatpush1.msra.mxu0 0.0
        %644 = vmatprep.subr.mxu0 0.0
        %645 = vmatpush1.msra.mxu0 0.0
        %646 = vmatprep.subr.mxu0 0.0
        %647 = vmatpush1.msra.mxu0 0.0
        %648 = vmatprep.subr.mxu0 0.0
        %649 = vmatpush1.msra.mxu0 0.0
        %650 = vmatprep.subr.mxu0 0.0
        %651 = vmatpush1.msra.mxu0 0.0
        %652 = vmatprep.subr.mxu0 0.0
        %653 = vmatpush1.msra.mxu0 0.0
        %654 = vmatprep.mubr.f32.mxu0 0.0
        %655 = vmatmul.mubr.f32.gmra.mrb[0].mxu0 %v518
        %v656 = vpop.f32.mrb[0].mxu0
        %v657 = vadd.f32 0.0, %v656
        %v658 = vpop.f32.mrb[0].mxu0
        %659 = vdwg.mxu0
        %v660 = vadd.f32 %v359, %v586
        %v661 = vxor.u32 %v660, 2147483648
        %v662 = vmul.f32 %v661, 1.442695
        %v663 = vpow.pop %v662
        %v664 = vadd.f32 %v663, 1.0
        %v665 = vrcp.pop %v664
        %v666 = vmul.f32 1.0, %v665
        %v667 = vadd.f32 %v361, %v588
        %v668 = vxor.u32 %v667, 2147483648
        %v669 = vmul.f32 %v668, 1.442695
        %v670 = vpow.pop %v669
        %v671 = vadd.f32 %v670, 1.0
        %v672 = vrcp.pop %v671
        %v673 = vmul.f32 1.0, %v672
        %v675 = vlaneseq
        %v676 = vshrl.u32 %v675, 7
        %v677 = vsub.s32 0, %v676
        %v678 = vrot.slane %v514, %v677
        %v680 = vadd.f32 %v657, %v678
        %v681 = vmul.f32 %v666, %v680
        %v682 = vadd.f32 %v448, %v681
        %v683 = vtanh.pop %v682
        %v684 = vsub.f32 1.0, %v673
        %v685 = vmul.f32 %v684, %v683
        %v686 = vmul.f32 %v673, %v518
        %v687 = vadd.f32 %v685, %v686
        %v688 = vsel %vm517, %v687, -1e+30
        %689 = vmax.xlane.f32.xlu0 %v688
        %v690 = vpop.xlane.xlu0 %689
        %v691 = vsub.f32 %v688, %v690
        %v692 = vmul.f32 %v691, 1.442695
        %v693 = vpow.pop %v692
        %694 = vadd.xlane.f32.xlu0 %v693
        %v695 = vpop.xlane.xlu0 %694
        %v696 = vrcp.pop %v695
        %v697 = vmul.f32 %v695, %v696
        %v698 = vsub.f32 2.0, %v697
        %v699 = vmul.f32 %v696, %v698
        %v700 = vmul.f32 %v693, %v699
        %701 = vst [vmem:[%s233] sm:$0xff] %v700
        %702 = vmatprep.subr.mxu0 %v467
        %703 = vmatpush1.msra.mxu0 %v466
        %704 = vmatprep.subr.mxu0 %v470
        %705 = vmatpush1.msra.mxu0 %v469
        %706 = vmatprep.subr.mxu0 %v473
        %707 = vmatpush1.msra.mxu0 %v472
        %708 = vmatprep.subr.mxu0 %v476
        %709 = vmatpush1.msra.mxu0 %v475
        %710 = vmatprep.subr.mxu0 %v479
        %711 = vmatpush1.msra.mxu0 %v478
        %712 = vmatprep.subr.mxu0 %v482
        %713 = vmatpush1.msra.mxu0 %v481
        %714 = vmatprep.subr.mxu0 %v485
        %715 = vmatpush1.msra.mxu0 %v484
        %716 = vmatprep.subr.mxu0 %v488
        %717 = vmatpush1.msra.mxu0 %v487
        %718 = vmatprep.subr.mxu0 %v491
        %719 = vmatpush1.msra.mxu0 %v490
        %720 = vmatprep.subr.mxu0 %v494
        %721 = vmatpush1.msra.mxu0 %v493
        %722 = vmatprep.subr.mxu0 %v497
        %723 = vmatpush1.msra.mxu0 %v496
        %724 = vmatprep.subr.mxu0 %v500
        %725 = vmatpush1.msra.mxu0 %v499
        %726 = vmatprep.subr.mxu0 %v503
        %727 = vmatpush1.msra.mxu0 %v502
        %728 = vmatprep.subr.mxu0 %v506
        %729 = vmatpush1.msra.mxu0 %v505
        %730 = vmatprep.subr.mxu0 %v509
        %731 = vmatpush1.msra.mxu0 %v508
        %732 = vmatprep.subr.mxu0 %v512
        %733 = vmatpush1.msra.mxu0 %v511
        %734 = vmatprep.subr.mxu0 0.0
        %735 = vmatpush1.msra.mxu0 0.0
        %736 = vmatprep.subr.mxu0 0.0
        %737 = vmatpush1.msra.mxu0 0.0
        %738 = vmatprep.subr.mxu0 0.0
        %739 = vmatpush1.msra.mxu0 0.0
        %740 = vmatprep.subr.mxu0 0.0
        %741 = vmatpush1.msra.mxu0 0.0
        %742 = vmatprep.subr.mxu0 0.0
        %743 = vmatpush1.msra.mxu0 0.0
        %744 = vmatprep.subr.mxu0 0.0
        %745 = vmatpush1.msra.mxu0 0.0
        %746 = vmatprep.subr.mxu0 0.0
        %747 = vmatpush1.msra.mxu0 0.0
        %748 = vmatprep.subr.mxu0 0.0
        %749 = vmatpush1.msra.mxu0 0.0
        %750 = vmatprep.subr.mxu0 0.0
        %751 = vmatpush1.msra.mxu0 0.0
        %752 = vmatprep.subr.mxu0 0.0
        %753 = vmatpush1.msra.mxu0 0.0
        %754 = vmatprep.subr.mxu0 0.0
        %755 = vmatpush1.msra.mxu0 0.0
        %756 = vmatprep.subr.mxu0 0.0
        %757 = vmatpush1.msra.mxu0 0.0
        %758 = vmatprep.subr.mxu0 0.0
        %759 = vmatpush1.msra.mxu0 0.0
        %760 = vmatprep.subr.mxu0 0.0
        %761 = vmatpush1.msra.mxu0 0.0
        %762 = vmatprep.subr.mxu0 0.0
        %763 = vmatpush1.msra.mxu0 0.0
        %764 = vmatprep.subr.mxu0 0.0
        %765 = vmatpush1.msra.mxu0 0.0
        %766 = vmatprep.mubr.f32.mxu0 0.0
        %767 = vmatmul.mubr.f32.gmra.mrb[0].mxu0 %v687
        %v768 = vpop.f32.mrb[0].mxu0
        %v769 = vadd.f32 0.0, %v768
        %v770 = vpop.f32.mrb[0].mxu0
        %v771 = vadd.f32 0.0, %v770
        %772 = vdwg.mxu0
        %773 = vmatprep.subr.mxu0 0.0
        %774 = vmatpush1.msra.mxu0 %v468
        %775 = vmatprep.subr.mxu0 0.0
        %776 = vmatpush1.msra.mxu0 %v471
        %777 = vmatprep.subr.mxu0 0.0
        %778 = vmatpush1.msra.mxu0 %v474
        %779 = vmatprep.subr.mxu0 0.0
        %780 = vmatpush1.msra.mxu0 %v477
        %781 = vmatprep.subr.mxu0 0.0
        %782 = vmatpush1.msra.mxu0 %v480
        %783 = vmatprep.subr.mxu0 0.0
        %784 = vmatpush1.msra.mxu0 %v483
        %785 = vmatprep.subr.mxu0 0.0
        %786 = vmatpush1.msra.mxu0 %v486
        %787 = vmatprep.subr.mxu0 0.0
        %788 = vmatpush1.msra.mxu0 %v489
        %789 = vmatprep.subr.mxu0 0.0
        %790 = vmatpush1.msra.mxu0 %v492
        %791 = vmatprep.subr.mxu0 0.0
        %792 = vmatpush1.msra.mxu0 %v495
        %793 = vmatprep.subr.mxu0 0.0
        %794 = vmatpush1.msra.mxu0 %v498
        %795 = vmatprep.subr.mxu0 0.0
        %796 = vmatpush1.msra.mxu0 %v501
        %797 = vmatprep.subr.mxu0 0.0
        %798 = vmatpush1.msra.mxu0 %v504
        %799 = vmatprep.subr.mxu0 0.0
        %800 = vmatpush1.msra.mxu0 %v507
        %801 = vmatprep.subr.mxu0 0.0
        %802 = vmatpush1.msra.mxu0 %v510
        %803 = vmatprep.subr.mxu0 0.0
        %804 = vmatpush1.msra.mxu0 %v513
        %805 = vmatprep.subr.mxu0 0.0
        %806 = vmatpush1.msra.mxu0 0.0
        %807 = vmatprep.subr.mxu0 0.0
        %808 = vmatpush1.msra.mxu0 0.0
        %809 = vmatprep.subr.mxu0 0.0
        %810 = vmatpush1.msra.mxu0 0.0
        %811 = vmatprep.subr.mxu0 0.0
        %812 = vmatpush1.msra.mxu0 0.0
        %813 = vmatprep.subr.mxu0 0.0
        %814 = vmatpush1.msra.mxu0 0.0
        %815 = vmatprep.subr.mxu0 0.0
        %816 = vmatpush1.msra.mxu0 0.0
        %817 = vmatprep.subr.mxu0 0.0
        %818 = vmatpush1.msra.mxu0 0.0
        %819 = vmatprep.subr.mxu0 0.0
        %820 = vmatpush1.msra.mxu0 0.0
        %821 = vmatprep.subr.mxu0 0.0
        %822 = vmatpush1.msra.mxu0 0.0
        %823 = vmatprep.subr.mxu0 0.0
        %824 = vmatpush1.msra.mxu0 0.0
        %825 = vmatprep.subr.mxu0 0.0
        %826 = vmatpush1.msra.mxu0 0.0
        %827 = vmatprep.subr.mxu0 0.0
        %828 = vmatpush1.msra.mxu0 0.0
        %829 = vmatprep.subr.mxu0 0.0
        %830 = vmatpush1.msra.mxu0 0.0
        %831 = vmatprep.subr.mxu0 0.0
        %832 = vmatpush1.msra.mxu0 0.0
        %833 = vmatprep.subr.mxu0 0.0
        %834 = vmatpush1.msra.mxu0 0.0
        %835 = vmatprep.subr.mxu0 0.0
        %836 = vmatpush1.msra.mxu0 0.0
        %837 = vmatprep.mubr.f32.mxu0 0.0
        %838 = vmatmul.mubr.f32.gmra.mrb[0].mxu0 %v687
        %v839 = vpop.f32.mrb[0].mxu0
        %v840 = vadd.f32 0.0, %v839
        %v841 = vpop.f32.mrb[0].mxu0
        %842 = vdwg.mxu0
        %v843 = vadd.f32 %v365, %v769
        %v844 = vxor.u32 %v843, 2147483648
        %v845 = vmul.f32 %v844, 1.442695
        %v846 = vpow.pop %v845
        %v847 = vadd.f32 %v846, 1.0
        %v848 = vrcp.pop %v847
        %v849 = vmul.f32 1.0, %v848
        %v850 = vadd.f32 %v367, %v771
        %v851 = vxor.u32 %v850, 2147483648
        %v852 = vmul.f32 %v851, 1.442695
        %v853 = vpow.pop %v852
        %v854 = vadd.f32 %v853, 1.0
        %v855 = vrcp.pop %v854
        %v856 = vmul.f32 1.0, %v855
        %v857 = vadd.f32 %v840, %v678
        %v858 = vmul.f32 %v849, %v857
        %v859 = vadd.f32 %v453, %v858
        %v860 = vtanh.pop %v859
        %v861 = vsub.f32 1.0, %v856
        %v862 = vmul.f32 %v861, %v860
        %v863 = vmul.f32 %v856, %v687
        %v864 = vadd.f32 %v862, %v863
        %v865 = vsel %vm517, %v864, -1e+30
        %866 = vmax.xlane.f32.xlu0 %v865
        %v867 = vpop.xlane.xlu0 %866
        %v868 = vsub.f32 %v865, %v867
        %v869 = vmul.f32 %v868, 1.442695
        %v870 = vpow.pop %v869
        %871 = vadd.xlane.f32.xlu0 %v870
        %v872 = vpop.xlane.xlu0 %871
        %v873 = vrcp.pop %v872
        %v874 = vmul.f32 %v872, %v873
        %v875 = vsub.f32 2.0, %v874
        %v876 = vmul.f32 %v873, %v875
        %v877 = vmul.f32 %v870, %v876
        %878 = vst [vmem:[%s233 + $0x8] sm:$0xff] %v877
        %879 = vmatprep.subr.mxu0 %v467
        %880 = vmatpush1.msra.mxu0 %v466
        %881 = vmatprep.subr.mxu0 %v470
        %882 = vmatpush1.msra.mxu0 %v469
        %883 = vmatprep.subr.mxu0 %v473
        %884 = vmatpush1.msra.mxu0 %v472
        %885 = vmatprep.subr.mxu0 %v476
        %886 = vmatpush1.msra.mxu0 %v475
        %887 = vmatprep.subr.mxu0 %v479
        %888 = vmatpush1.msra.mxu0 %v478
        %889 = vmatprep.subr.mxu0 %v482
        %890 = vmatpush1.msra.mxu0 %v481
        %891 = vmatprep.subr.mxu0 %v485
        %892 = vmatpush1.msra.mxu0 %v484
        %893 = vmatprep.subr.mxu0 %v488
        %894 = vmatpush1.msra.mxu0 %v487
        %895 = vmatprep.subr.mxu0 %v491
        %896 = vmatpush1.msra.mxu0 %v490
        %897 = vmatprep.subr.mxu0 %v494
        %898 = vmatpush1.msra.mxu0 %v493
        %899 = vmatprep.subr.mxu0 %v497
        %900 = vmatpush1.msra.mxu0 %v496
        %901 = vmatprep.subr.mxu0 %v500
        %902 = vmatpush1.msra.mxu0 %v499
        %903 = vmatprep.subr.mxu0 %v503
        %904 = vmatpush1.msra.mxu0 %v502
        %905 = vmatprep.subr.mxu0 %v506
        %906 = vmatpush1.msra.mxu0 %v505
        %907 = vmatprep.subr.mxu0 %v509
        %908 = vmatpush1.msra.mxu0 %v508
        %909 = vmatprep.subr.mxu0 %v512
        %910 = vmatpush1.msra.mxu0 %v511
        %911 = vmatprep.subr.mxu0 0.0
        %912 = vmatpush1.msra.mxu0 0.0
        %913 = vmatprep.subr.mxu0 0.0
        %914 = vmatpush1.msra.mxu0 0.0
        %915 = vmatprep.subr.mxu0 0.0
        %916 = vmatpush1.msra.mxu0 0.0
        %917 = vmatprep.subr.mxu0 0.0
        %918 = vmatpush1.msra.mxu0 0.0
        %919 = vmatprep.subr.mxu0 0.0
        %920 = vmatpush1.msra.mxu0 0.0
        %921 = vmatprep.subr.mxu0 0.0
        %922 = vmatpush1.msra.mxu0 0.0
        %923 = vmatprep.subr.mxu0 0.0
        %924 = vmatpush1.msra.mxu0 0.0
        %925 = vmatprep.subr.mxu0 0.0
        %926 = vmatpush1.msra.mxu0 0.0
        %927 = vmatprep.subr.mxu0 0.0
        %928 = vmatpush1.msra.mxu0 0.0
        %929 = vmatprep.subr.mxu0 0.0
        %930 = vmatpush1.msra.mxu0 0.0
        %931 = vmatprep.subr.mxu0 0.0
        %932 = vmatpush1.msra.mxu0 0.0
        %933 = vmatprep.subr.mxu0 0.0
        %934 = vmatpush1.msra.mxu0 0.0
        %935 = vmatprep.subr.mxu0 0.0
        %936 = vmatpush1.msra.mxu0 0.0
        %937 = vmatprep.subr.mxu0 0.0
        %938 = vmatpush1.msra.mxu0 0.0
        %939 = vmatprep.subr.mxu0 0.0
        %940 = vmatpush1.msra.mxu0 0.0
        %941 = vmatprep.subr.mxu0 0.0
        %942 = vmatpush1.msra.mxu0 0.0
        %943 = vmatprep.mubr.f32.mxu0 0.0
        %944 = vmatmul.mubr.f32.gmra.mrb[0].mxu0 %v864
        %v945 = vpop.f32.mrb[0].mxu0
        %v946 = vadd.f32 0.0, %v945
        %v947 = vpop.f32.mrb[0].mxu0
        %v948 = vadd.f32 0.0, %v947
        %949 = vdwg.mxu0
        %950 = vmatprep.subr.mxu0 0.0
        %951 = vmatpush1.msra.mxu0 %v468
        %952 = vmatprep.subr.mxu0 0.0
        %953 = vmatpush1.msra.mxu0 %v471
        %954 = vmatprep.subr.mxu0 0.0
        %955 = vmatpush1.msra.mxu0 %v474
        %956 = vmatprep.subr.mxu0 0.0
        %957 = vmatpush1.msra.mxu0 %v477
        %958 = vmatprep.subr.mxu0 0.0
        %959 = vmatpush1.msra.mxu0 %v480
        %960 = vmatprep.subr.mxu0 0.0
        %961 = vmatpush1.msra.mxu0 %v483
        %962 = vmatprep.subr.mxu0 0.0
        %963 = vmatpush1.msra.mxu0 %v486
        %964 = vmatprep.subr.mxu0 0.0
        %965 = vmatpush1.msra.mxu0 %v489
        %966 = vmatprep.subr.mxu0 0.0
        %967 = vmatpush1.msra.mxu0 %v492
        %968 = vmatprep.subr.mxu0 0.0
        %969 = vmatpush1.msra.mxu0 %v495
        %970 = vmatprep.subr.mxu0 0.0
        %971 = vmatpush1.msra.mxu0 %v498
        %972 = vmatprep.subr.mxu0 0.0
        %973 = vmatpush1.msra.mxu0 %v501
        %974 = vmatprep.subr.mxu0 0.0
        %975 = vmatpush1.msra.mxu0 %v504
        %976 = vmatprep.subr.mxu0 0.0
        %977 = vmatpush1.msra.mxu0 %v507
        %978 = vmatprep.subr.mxu0 0.0
        %979 = vmatpush1.msra.mxu0 %v510
        %980 = vmatprep.subr.mxu0 0.0
        %981 = vmatpush1.msra.mxu0 %v513
        %982 = vmatprep.subr.mxu0 0.0
        %983 = vmatpush1.msra.mxu0 0.0
        %984 = vmatprep.subr.mxu0 0.0
        %985 = vmatpush1.msra.mxu0 0.0
        %986 = vmatprep.subr.mxu0 0.0
        %987 = vmatpush1.msra.mxu0 0.0
        %988 = vmatprep.subr.mxu0 0.0
        %989 = vmatpush1.msra.mxu0 0.0
        %990 = vmatprep.subr.mxu0 0.0
        %991 = vmatpush1.msra.mxu0 0.0
        %992 = vmatprep.subr.mxu0 0.0
        %993 = vmatpush1.msra.mxu0 0.0
        %994 = vmatprep.subr.mxu0 0.0
        %995 = vmatpush1.msra.mxu0 0.0
        %996 = vmatprep.subr.mxu0 0.0
        %997 = vmatpush1.msra.mxu0 0.0
        %998 = vmatprep.subr.mxu0 0.0
        %999 = vmatpush1.msra.mxu0 0.0
        %1000 = vmatprep.subr.mxu0 0.0
        %1001 = vmatpush1.msra.mxu0 0.0
        %1002 = vmatprep.subr.mxu0 0.0
        %1003 = vmatpush1.msra.mxu0 0.0
        %1004 = vmatprep.subr.mxu0 0.0
        %1005 = vmatpush1.msra.mxu0 0.0
        %1006 = vmatprep.subr.mxu0 0.0
        %1007 = vmatpush1.msra.mxu0 0.0
        %1008 = vmatprep.subr.mxu0 0.0
        %1009 = vmatpush1.msra.mxu0 0.0
        %1010 = vmatprep.subr.mxu0 0.0
        %1011 = vmatpush1.msra.mxu0 0.0
        %1012 = vmatprep.subr.mxu0 0.0
        %1013 = vmatpush1.msra.mxu0 0.0
        %1014 = vmatprep.mubr.f32.mxu0 0.0
        %1015 = vmatmul.mubr.f32.gmra.mrb[0].mxu0 %v864
        %v1016 = vpop.f32.mrb[0].mxu0
        %v1017 = vadd.f32 0.0, %v1016
        %v1018 = vpop.f32.mrb[0].mxu0
        %1019 = vdwg.mxu0
        %v1020 = vadd.f32 %v371, %v946
        %v1021 = vxor.u32 %v1020, 2147483648
        %v1022 = vmul.f32 %v1021, 1.442695
        %v1023 = vpow.pop %v1022
        %v1024 = vadd.f32 %v1023, 1.0
        %v1025 = vrcp.pop %v1024
        %v1026 = vmul.f32 1.0, %v1025
        %v1027 = vadd.f32 %v373, %v948
        %v1028 = vxor.u32 %v1027, 2147483648
        %v1029 = vmul.f32 %v1028, 1.442695
        %v1030 = vpow.pop %v1029
        %v1031 = vadd.f32 %v1030, 1.0
        %v1032 = vrcp.pop %v1031
        %v1033 = vmul.f32 1.0, %v1032
        %v1034 = vadd.f32 %v1017, %v678
        %v1035 = vmul.f32 %v1026, %v1034
        %v1036 = vadd.f32 %v458, %v1035
        %v1037 = vtanh.pop %v1036
        %v1038 = vsub.f32 1.0, %v1033
        %v1039 = vmul.f32 %v1038, %v1037
        %v1040 = vmul.f32 %v1033, %v864
        %v1041 = vadd.f32 %v1039, %v1040
        %v1042 = vsel %vm517, %v1041, -1e+30
        %1043 = vmax.xlane.f32.xlu0 %v1042
        %v1044 = vpop.xlane.xlu0 %1043
        %v1045 = vsub.f32 %v1042, %v1044
        %v1046 = vmul.f32 %v1045, 1.442695
        %v1047 = vpow.pop %v1046
        %1048 = vadd.xlane.f32.xlu0 %v1047
        %v1049 = vpop.xlane.xlu0 %1048
        %v1050 = vrcp.pop %v1049
        %v1051 = vmul.f32 %v1049, %v1050
        %v1052 = vsub.f32 2.0, %v1051
        %v1053 = vmul.f32 %v1050, %v1052
        %v1054 = vmul.f32 %v1047, %v1053
        %1055 = vst [vmem:[%s233 + $0x10] sm:$0xff] %v1054
        %1056 = vmatprep.subr.mxu0 %v467
        %1057 = vmatpush1.msra.mxu0 %v466
        %1058 = vmatprep.subr.mxu0 %v470
        %1059 = vmatpush1.msra.mxu0 %v469
        %1060 = vmatprep.subr.mxu0 %v473
        %1061 = vmatpush1.msra.mxu0 %v472
        %1062 = vmatprep.subr.mxu0 %v476
        %1063 = vmatpush1.msra.mxu0 %v475
        %1064 = vmatprep.subr.mxu0 %v479
        %1065 = vmatpush1.msra.mxu0 %v478
        %1066 = vmatprep.subr.mxu0 %v482
        %1067 = vmatpush1.msra.mxu0 %v481
        %1068 = vmatprep.subr.mxu0 %v485
        %1069 = vmatpush1.msra.mxu0 %v484
        %1070 = vmatprep.subr.mxu0 %v488
        %1071 = vmatpush1.msra.mxu0 %v487
        %1072 = vmatprep.subr.mxu0 %v491
        %1073 = vmatpush1.msra.mxu0 %v490
        %1074 = vmatprep.subr.mxu0 %v494
        %1075 = vmatpush1.msra.mxu0 %v493
        %1076 = vmatprep.subr.mxu0 %v497
        %1077 = vmatpush1.msra.mxu0 %v496
        %1078 = vmatprep.subr.mxu0 %v500
        %1079 = vmatpush1.msra.mxu0 %v499
        %1080 = vmatprep.subr.mxu0 %v503
        %1081 = vmatpush1.msra.mxu0 %v502
        %1082 = vmatprep.subr.mxu0 %v506
        %1083 = vmatpush1.msra.mxu0 %v505
        %1084 = vmatprep.subr.mxu0 %v509
        %1085 = vmatpush1.msra.mxu0 %v508
        %1086 = vmatprep.subr.mxu0 %v512
        %1087 = vmatpush1.msra.mxu0 %v511
        %1088 = vmatprep.subr.mxu0 0.0
        %1089 = vmatpush1.msra.mxu0 0.0
        %1090 = vmatprep.subr.mxu0 0.0
        %1091 = vmatpush1.msra.mxu0 0.0
        %1092 = vmatprep.subr.mxu0 0.0
        %1093 = vmatpush1.msra.mxu0 0.0
        %1094 = vmatprep.subr.mxu0 0.0
        %1095 = vmatpush1.msra.mxu0 0.0
        %1096 = vmatprep.subr.mxu0 0.0
        %1097 = vmatpush1.msra.mxu0 0.0
        %1098 = vmatprep.subr.mxu0 0.0
        %1099 = vmatpush1.msra.mxu0 0.0
        %1100 = vmatprep.subr.mxu0 0.0
        %1101 = vmatpush1.msra.mxu0 0.0
        %1102 = vmatprep.subr.mxu0 0.0
        %1103 = vmatpush1.msra.mxu0 0.0
        %1104 = vmatprep.subr.mxu0 0.0
        %1105 = vmatpush1.msra.mxu0 0.0
        %1106 = vmatprep.subr.mxu0 0.0
        %1107 = vmatpush1.msra.mxu0 0.0
        %1108 = vmatprep.subr.mxu0 0.0
        %1109 = vmatpush1.msra.mxu0 0.0
        %1110 = vmatprep.subr.mxu0 0.0
        %1111 = vmatpush1.msra.mxu0 0.0
        %1112 = vmatprep.subr.mxu0 0.0
        %1113 = vmatpush1.msra.mxu0 0.0
        %1114 = vmatprep.subr.mxu0 0.0
        %1115 = vmatpush1.msra.mxu0 0.0
        %1116 = vmatprep.subr.mxu0 0.0
        %1117 = vmatpush1.msra.mxu0 0.0
        %1118 = vmatprep.subr.mxu0 0.0
        %1119 = vmatpush1.msra.mxu0 0.0
        %1120 = vmatprep.mubr.f32.mxu0 0.0
        %1121 = vmatmul.mubr.f32.gmra.mrb[0].mxu0 %v1041
        %v1122 = vpop.f32.mrb[0].mxu0
        %v1123 = vadd.f32 0.0, %v1122
        %v1124 = vpop.f32.mrb[0].mxu0
        %v1125 = vadd.f32 0.0, %v1124
        %1126 = vdwg.mxu0
        %1127 = vmatprep.subr.mxu0 0.0
        %1128 = vmatpush1.msra.mxu0 %v468
        %1129 = vmatprep.subr.mxu0 0.0
        %1130 = vmatpush1.msra.mxu0 %v471
        %1131 = vmatprep.subr.mxu0 0.0
        %1132 = vmatpush1.msra.mxu0 %v474
        %1133 = vmatprep.subr.mxu0 0.0
        %1134 = vmatpush1.msra.mxu0 %v477
        %1135 = vmatprep.subr.mxu0 0.0
        %1136 = vmatpush1.msra.mxu0 %v480
        %1137 = vmatprep.subr.mxu0 0.0
        %1138 = vmatpush1.msra.mxu0 %v483
        %1139 = vmatprep.subr.mxu0 0.0
        %1140 = vmatpush1.msra.mxu0 %v486
        %1141 = vmatprep.subr.mxu0 0.0
        %1142 = vmatpush1.msra.mxu0 %v489
        %1143 = vmatprep.subr.mxu0 0.0
        %1144 = vmatpush1.msra.mxu0 %v492
        %1145 = vmatprep.subr.mxu0 0.0
        %1146 = vmatpush1.msra.mxu0 %v495
        %1147 = vmatprep.subr.mxu0 0.0
        %1148 = vmatpush1.msra.mxu0 %v498
        %1149 = vmatprep.subr.mxu0 0.0
        %1150 = vmatpush1.msra.mxu0 %v501
        %1151 = vmatprep.subr.mxu0 0.0
        %1152 = vmatpush1.msra.mxu0 %v504
        %1153 = vmatprep.subr.mxu0 0.0
        %1154 = vmatpush1.msra.mxu0 %v507
        %1155 = vmatprep.subr.mxu0 0.0
        %1156 = vmatpush1.msra.mxu0 %v510
        %1157 = vmatprep.subr.mxu0 0.0
        %1158 = vmatpush1.msra.mxu0 %v513
        %1159 = vmatprep.subr.mxu0 0.0
        %1160 = vmatpush1.msra.mxu0 0.0
        %1161 = vmatprep.subr.mxu0 0.0
        %1162 = vmatpush1.msra.mxu0 0.0
        %1163 = vmatprep.subr.mxu0 0.0
        %1164 = vmatpush1.msra.mxu0 0.0
        %1165 = vmatprep.subr.mxu0 0.0
        %1166 = vmatpush1.msra.mxu0 0.0
        %1167 = vmatprep.subr.mxu0 0.0
        %1168 = vmatpush1.msra.mxu0 0.0
        %1169 = vmatprep.subr.mxu0 0.0
        %1170 = vmatpush1.msra.mxu0 0.0
        %1171 = vmatprep.subr.mxu0 0.0
        %1172 = vmatpush1.msra.mxu0 0.0
        %1173 = vmatprep.subr.mxu0 0.0
        %1174 = vmatpush1.msra.mxu0 0.0
        %1175 = vmatprep.subr.mxu0 0.0
        %1176 = vmatpush1.msra.mxu0 0.0
        %1177 = vmatprep.subr.mxu0 0.0
        %1178 = vmatpush1.msra.mxu0 0.0
        %1179 = vmatprep.subr.mxu0 0.0
        %1180 = vmatpush1.msra.mxu0 0.0
        %1181 = vmatprep.subr.mxu0 0.0
        %1182 = vmatpush1.msra.mxu0 0.0
        %1183 = vmatprep.subr.mxu0 0.0
        %1184 = vmatpush1.msra.mxu0 0.0
        %1185 = vmatprep.subr.mxu0 0.0
        %1186 = vmatpush1.msra.mxu0 0.0
        %1187 = vmatprep.subr.mxu0 0.0
        %1188 = vmatpush1.msra.mxu0 0.0
        %1189 = vmatprep.subr.mxu0 0.0
        %1190 = vmatpush1.msra.mxu0 0.0
        %1191 = vmatprep.mubr.f32.mxu0 0.0
        %1192 = vmatmul.mubr.f32.gmra.mrb[0].mxu0 %v1041
        %v1193 = vpop.f32.mrb[0].mxu0
        %v1194 = vadd.f32 0.0, %v1193
        %v1195 = vpop.f32.mrb[0].mxu0
        %1196 = vdwg.mxu0
        %v1197 = vadd.f32 %v377, %v1123
        %v1198 = vxor.u32 %v1197, 2147483648
        %v1199 = vmul.f32 %v1198, 1.442695
        %v1200 = vpow.pop %v1199
        %v1201 = vadd.f32 %v1200, 1.0
        %v1202 = vrcp.pop %v1201
        %v1203 = vmul.f32 1.0, %v1202
        %v1204 = vadd.f32 %v379, %v1125
        %v1205 = vxor.u32 %v1204, 2147483648
        %v1206 = vmul.f32 %v1205, 1.442695
        %v1207 = vpow.pop %v1206
        %v1208 = vadd.f32 %v1207, 1.0
        %v1209 = vrcp.pop %v1208
        %v1210 = vmul.f32 1.0, %v1209
        %v1211 = vadd.f32 %v1194, %v678
        %v1212 = vmul.f32 %v1203, %v1211
        %v1213 = vadd.f32 %v463, %v1212
        %v1214 = vtanh.pop %v1213
        %v1215 = vsub.f32 1.0, %v1210
        %v1216 = vmul.f32 %v1215, %v1214
        %v1217 = vmul.f32 %v1210, %v1041
        %v1218 = vadd.f32 %v1216, %v1217
        %v1219 = vsel %vm517, %v1218, -1e+30
        %1220 = vmax.xlane.f32.xlu0 %v1219
        %v1221 = vpop.xlane.xlu0 %1220
        %v1222 = vsub.f32 %v1219, %v1221
        %v1223 = vmul.f32 %v1222, 1.442695
        %v1224 = vpow.pop %v1223
        %1225 = vadd.xlane.f32.xlu0 %v1224
        %v1226 = vpop.xlane.xlu0 %1225
        %v1227 = vrcp.pop %v1226
        %v1228 = vmul.f32 %v1226, %v1227
        %v1229 = vsub.f32 2.0, %v1228
        %v1230 = vmul.f32 %v1227, %v1229
        %v1231 = vmul.f32 %v1224, %v1230
        %1232 = vst [vmem:[%s233 + $0x18] sm:$0xff] %v1231
        %1233 = vst [vmem:[#allocation2] sm:$0xff] %v1218
        %s1234 = sand.u32 %s138, 1
        %s1235 = scalar_lea.sflag [#allocation5], %s1234
        %s1236 = sand.u32 %s138, 1
        %s1237 = smul.addr %s1236, 32
        %s1238 = scalar_lea.vmem [#allocation6], %s1237
        // Predicated region
        $region49: #{tpu_custom_call.1} parent=39 // pred_check
          %p1239 = pneg %p148
        $region50: #{tpu_custom_call.1} parent=39 // pred_check_branch
          %1241 = sbr.rel (%p1239) target = $region52
        $region51: #{tpu_custom_call.1} parent=39 // pred_region
          %s1242 = smul.u32 4, %s20
          %s1244 = ssub.s32 512, 512
          %1245 = vsyncadd %s1235, %s1244
          %s1246 = smul.addr %s1242, 128
          %s1247 = scalar_lea.hbm %s5, %s1246
          %s1248 = sshll.u32 %s1238, 4
          %s1249 = int_to_ptr.vmem [resolvable:$true] %s1248
          %1254 = dma.vmem_to_hbm [thread:$0]  %s1249, 512, %s1247, %s1235, 128, 128, 8
        $region52: #{tpu_custom_call.1} parent=39 // pred_fallthru
          _
      $region40: #{tpu_custom_call.1} parent=5 // pred_fallthru
        _
      %p1255 = scmp.le.s32.totalorder 2, %s15
      // Predicated region
      $region53: #{tpu_custom_call.1} parent=5 // pred_check
        %p1256 = pneg %p1255
      $region54: #{tpu_custom_call.1} parent=5 // pred_check_branch
        %1258 = sbr.rel (%p1256) target = $region56
      $region55: #{tpu_custom_call.1} parent=5 // pred_region
        %s1259 = ssub.s32 %s15, 2
        // Predicated region
        $region57: #{tpu_custom_call.1} parent=55 // pred_check
          %p1260 = pneg %p154
        $region58: #{tpu_custom_call.1} parent=55 // pred_check_branch
          %1262 = sbr.rel (%p1260) target = $region60
        $region59: #{tpu_custom_call.1} parent=55 // pred_region
          %s1263 = sand.u32 %s139, 1
          %s1264 = scalar_lea.sflag [#allocation5], %s1263
          %s1265 = sand.u32 %s139, 1
          %s1266 = smul.addr %s1265, 32
          %s1267 = scalar_lea.vmem [#allocation6], %s1266
          %1268 = dma.done %s1264, 512
        $region60: #{tpu_custom_call.1} parent=55 // pred_fallthru
          _
      $region56: #{tpu_custom_call.1} parent=5 // pred_fallthru
        _
    $region6: #{tpu_custom_call.1} parent=1 // loop_footer
      %s19 = sadd.s32 1, %s15
    $region7: #{tpu_custom_call.1} parent=1 // loop_footer_branch
      %14 = sbr.rel target = $region3
    $region8: #{tpu_custom_call.1} parent=1 // loop_exit
      _
    %1269 = vsyncpa [#allocation4], 1
    %s1270 = scalar_lea.sflag [#allocation4], 1
    %1271 = vsyncpa %s1270, 1
    %1272 = vsyncpa [#allocation5], 1
    %s1273 = scalar_lea.sflag [#allocation5], 1
    %1274 = vsyncpa %s1273, 1

</llo_original>
